<compile_context>
chip_gen: v7x
topology: tpu7x:2x2x1
jax: 0.10.0
libtpu: 0.0.40
codegen_flags: <defaults>
</compile_context>

<pallas_src>
import functools

import jax
import jax.numpy as jnp
from jax.experimental import pallas as pl

LANE = 128   # TPU lane width
EMB = 64     # per-block embedding width


def _round_up(x, m):
    return ((x + m - 1) // m) * m


def _full_spec(shape):
    """Whole-array BlockSpec (no grid)."""
    rank = len(shape)

    def idx_map():
        return (0,) * rank

    return pl.BlockSpec(shape, idx_map)


# ----------------------------------------------------------------------------
# Fused forward kernel
# ----------------------------------------------------------------------------
def _wb_fused_kernel(*refs, n_blocks, grad_start, n_grad, batch, apply_sigmoid):
    x_ref, w1s, b1s, w2s, b2s = refs[0:5]
    off = 5
    if n_grad:
        w3s, b3s = refs[5:7]
        off = 7
    ew1, ew234, eb = refs[off:off + 3]
    out_ref = refs[off + 3]

    def dense(h, w, b, relu=True):
        acc = jnp.dot(h.astype(jnp.bfloat16), w,
                      preferred_element_type=jnp.float32) + b
        if relu:
            acc = jnp.maximum(acc, 0.0)
        return acc

    n_pairs = (n_blocks + 1) // 2

    # --- embedding blocks, accumulated straight into encoder layer 1 --------
    # Pair (2j, 2j+1): odd block's final-layer columns are pre-shifted by 64,
    # so emb_{2j} + emb_{2j+1} is one 128-lane slot in PyTorch concat order.
    acc1 = None
    for j in range(n_pairs):
        pair_emb = None
        for i in (2 * j, 2 * j + 1):
            if i >= n_blocks:
                continue
            h = dense(x_ref[i], w1s[i], b1s[i])        # in -> 128 (or conv-as-matmul)
            h = dense(h, w2s[i], b2s[i])               # 128 -> 64 (or grad l1 -> 128)
            if i >= grad_start:
                g = i - grad_start
                h = dense(h, w3s[g], b3s[g])           # grad l2: 128 -> 64
            pair_emb = h if pair_emb is None else pair_emb + h
        contrib = jnp.dot(pair_emb.astype(jnp.bfloat16),
                          ew1[LANE * j:LANE * (j + 1), :],
                          preferred_element_type=jnp.float32)
        acc1 = contrib if acc1 is None else acc1 + contrib

    # --- encoder -------------------------------------------------------------
    h = jnp.maximum(acc1 + eb[0:1, :], 0.0)                        # -> 256
    h = dense(h, ew234[0:256, :], eb[1:2, 0:LANE])                 # 256 -> 128
    h = dense(h, ew234[256:384, :], eb[2:3, 0:LANE])               # 128 -> 64 (padded)
    h = dense(h, ew234[384:512, :], eb[3:4, 0:LANE], relu=False)   # 64 -> 1  (padded)
    logits = h[:batch, :1]
    if apply_sigmoid:
        logits = 1.0 / (1.0 + jnp.exp(-logits))        # fused sigmoid epilogue
    out_ref[...] = logits.astype(out_ref.dtype)


def _wb_forward_impl(params, label, loss, out_list, grad_list, apply_sigmoid):
    xs = [label, loss] + list(out_list)
    for g in grad_list:
        b_, c_, h_, w_ = g.shape
        assert c_ == 1
        xs.append(g.reshape(b_, h_ * w_))              # free reshape (conv folded at init)

    batch = label.shape[0]
    n_blocks = len(xs)
    n_grad = len(grad_list)
    grad_start = n_blocks - n_grad
    k_pad = params["W1s"].shape[1]
    bp = max(8, _round_up(batch, 8))

    # Pad + stack all block inputs into ONE array (single DMA, no in-kernel pad).
    x_stacked = jnp.zeros((n_blocks, bp, k_pad), jnp.float32)
    for i, x in enumerate(xs):
        x_stacked = x_stacked.at[i, :batch, :x.shape[1]].set(x.astype(jnp.float32))

    args = [x_stacked, params["W1s"], params["B1s"], params["W2s"], params["B2s"]]
    if n_grad:
        args += [params["W3s"], params["B3s"]]
    args += [params["enc_w1"], params["enc_w234"], params["enc_b"]]

    kernel = functools.partial(_wb_fused_kernel, n_blocks=n_blocks,
                               grad_start=grad_start, n_grad=n_grad,
                               batch=batch, apply_sigmoid=apply_sigmoid)

    return pl.pallas_call(
        kernel,
        out_shape=jax.ShapeDtypeStruct((batch, 1), jnp.float32),
        in_specs=[_full_spec(a.shape) for a in args],
        out_specs=_full_spec((batch, 1)),
    )(*args)


@jax.jit
def wb_attacker_forward(params, label, loss, out_list, grad_list):
    return _wb_forward_impl(params, label, loss, out_list, grad_list,
                            apply_sigmoid=False)


@jax.jit
def wb_attacker_predict(params, label, loss, out_list, grad_list):
    return _wb_forward_impl(params, label, loss, out_list, grad_list,
                            apply_sigmoid=True)


# ----------------------------------------------------------------------------
# Parameter initialization (PyTorch-default uniform), padded / packed ONCE
# ----------------------------------------------------------------------------
def _init_linear(key, in_dim, out_dim):
    kw, kb = jax.random.split(key)
    scale = 1.0 / jnp.sqrt(jnp.float32(in_dim))
    w = jax.random.uniform(kw, (in_dim, out_dim), jnp.float32, -scale, scale)
    b = jax.random.uniform(kb, (out_dim,), jnp.float32, -scale, scale)
    return w, b


def _pad_weight(w, kp, np_, col_off=0):
    k, n = w.shape
    out = jnp.zeros((kp, np_), jnp.float32).at[:k, col_off:col_off + n].set(w)
    return out.astype(jnp.bfloat16)


def _pad_bias(b, np_, col_off=0):
    return jnp.zeros((1, np_), jnp.float32).at[0, col_off:col_off + b.shape[0]].set(b)


def _build_mlp_block(key, in_dim, k_pad, shift):
    # Linear(in,128)+ReLU -> Linear(128,64)+ReLU  (dropout omitted, eval mode)
    k1, k2 = jax.random.split(key)
    w1, b1 = _init_linear(k1, in_dim, 128)
    w2, b2 = _init_linear(k2, 128, EMB)
    off = EMB if shift else 0
    return dict(w1=_pad_weight(w1, k_pad, LANE), b1=_pad_bias(b1, LANE),
                w2=_pad_weight(w2, LANE, LANE, off), b2=_pad_bias(b2, LANE, off),
                w3=None, b3=None)


def _build_grad_block(key, grad_dim, num_filters, k_pad, shift):
    # Conv2d(1,F,(1,W))+ReLU -> Flatten -> Linear(F*H,128)+ReLU -> Linear(128,64)+ReLU
    # Conv folded into a block-diagonal (H*W, H*F) matmul (output columns in
    # order h*F+f); l1 weight rows permuted once (f*H+h -> h*F+f).
    W, H, F = grad_dim[0], grad_dim[1], num_filters
    assert H * W <= k_pad and H * F <= LANE
    kc, kcb, k1, k2 = jax.random.split(key, 4)
    scale = 1.0 / jnp.sqrt(jnp.float32(W))             # conv fan_in = 1*1*W
    cw = jax.random.uniform(kc, (F, W), jnp.float32, -scale, scale)
    cb = jax.random.uniform(kcb, (F,), jnp.float32, -scale, scale)
    cw_big = jnp.einsum("hk,fw->hwkf", jnp.eye(H, dtype=jnp.float32),
                        cw).reshape(H * W, H * F)
    cb_big = jnp.tile(cb, H)
    w1_t, b1 = _init_linear(k1, F * H, 128)            # rows in torch order f*H+h
    w1 = w1_t.reshape(F, H, 128).transpose(1, 0, 2).reshape(H * F, 128)
    w2, b2 = _init_linear(k2, 128, EMB)
    off = EMB if shift else 0
    return dict(w1=_pad_weight(cw_big, k_pad, LANE), b1=_pad_bias(cb_big, LANE),
                w2=_pad_weight(w1, LANE, LANE), b2=_pad_bias(b1, LANE),
                w3=_pad_weight(w2, LANE, LANE, off), b3=_pad_bias(b2, LANE, off))


def _build_encoder(key, enc_in, n_pairs):
    k1, k2, k3, k4 = jax.random.split(key, 4)
    w1, b1 = _init_linear(k1, enc_in, 256)
    w2, b2 = _init_linear(k2, 256, 128)
    w3, b3 = _init_linear(k3, 128, EMB)
    w4, b4 = _init_linear(k4, EMB, 1)
    # Pair-packed concat layout has column order 64*i+e == torch concat order,
    # so w1 is used verbatim (only zero-padded rows if n_blocks is odd).
    rows = LANE * n_pairs
    ew1 = jnp.zeros((rows, 256), jnp.float32).at[:enc_in, :].set(w1)
    ew1 = ew1.astype(jnp.bfloat16)
    ew234 = jnp.zeros((512, 128), jnp.float32)
    ew234 = ew234.at[0:256, :128].set(w2)
    ew234 = ew234.at[256:384, :EMB].set(w3)
    ew234 = ew234.at[384:384 + EMB, :1].set(w4)
    ew234 = ew234.astype(jnp.bfloat16)
    eb = jnp.zeros((4, 256), jnp.float32)
    eb = eb.at[0, :256].set(b1).at[1, :128].set(b2)
    eb = eb.at[2, :EMB].set(b3).at[3, :1].set(b4)
    return ew1, ew234, eb


def init_wb_attacker_params(key, label_dim, loss_dim, out_dim_list,
                            grad_dim_list, num_filters):
    n_out, n_grad = len(out_dim_list), len(grad_dim_list)
    n_blocks = 2 + n_out + n_grad
    n_pairs = (n_blocks + 1) // 2
    in_widths = ([label_dim, loss_dim] + list(out_dim_list)
                 + [gd[0] * gd[1] for gd in grad_dim_list])
    k_pad = max(32, _round_up(max(in_widths), 32))

    keys = jax.random.split(key, n_blocks + 1)
    blocks = [_build_mlp_block(keys[0], label_dim, k_pad, shift=False),
              _build_mlp_block(keys[1], loss_dim, k_pad, shift=True)]
    for i in range(n_out):
        idx = 2 + i
        blocks.append(_build_mlp_block(keys[idx], out_dim_list[i], k_pad,
                                       shift=(idx % 2 == 1)))
    for i in range(n_grad):
        idx = 2 + n_out + i
        blocks.append(_build_grad_block(keys[idx], grad_dim_list[i],
                                        num_filters, k_pad,
                                        shift=(idx % 2 == 1)))

    enc_in = EMB * n_blocks
    assert enc_in == 64 * (n_out + n_grad) + 128
    enc_w1, enc_w234, enc_b = _build_encoder(keys[-1], enc_in, n_pairs)

    params = {
        "W1s": jnp.stack([b["w1"] for b in blocks]),
        "B1s": jnp.stack([b["b1"] for b in blocks]),
        "W2s": jnp.stack([b["w2"] for b in blocks]),
        "B2s": jnp.stack([b["b2"] for b in blocks]),
        "enc_w1": enc_w1, "enc_w234": enc_w234, "enc_b": enc_b,
    }
    if n_grad:
        params["W3s"] = jnp.stack([b["w3"] for b in blocks[2 + n_out:]])
        params["B3s"] = jnp.stack([b["b3"] for b in blocks[2 + n_out:]])
    return params


# ----------------------------------------------------------------------------
# Main
# ----------------------------------------------------------------------------
if __name__ == "__main__":
    batch = 2
    label_dim = 6
    loss_dim = 1
    out_keys = ["fc1_out", "fc2_out"]
    out_dim_list = [10, 6]
    model_keys = ["layer1-weight", "layer2-weight"]
    grad_dim_list = [(4, 8), (3, 6)]      # (conv kernel width W, image rows H)
    num_filters = 4

    root = jax.random.PRNGKey(0)
    k_params, k_inputs = jax.random.split(root)

    params = init_wb_attacker_params(k_params, label_dim, loss_dim,
                                     out_dim_list, grad_dim_list, num_filters)

    ki = jax.random.split(k_inputs, 2 + len(out_keys) + len(model_keys))
    label = jax.random.normal(ki[0], (batch, label_dim), jnp.float32)
    loss = jax.random.normal(ki[1], (batch, loss_dim), jnp.float32)
    out_dict = {
        key: jax.random.normal(ki[2 + i], (batch, out_dim_list[i]), jnp.float32)
        for i, key in enumerate(out_keys)
    }
    grad_dict = {
        key: jax.random.normal(
            ki[2 + len(out_keys) + i],
            (batch, 1, grad_dim_list[i][1], grad_dim_list[i][0]),
            jnp.float32)
        for i, key in enumerate(model_keys)
    }

    # ordered lists matching the torch.cat order in WbAttacker.forward
    out_list = [out_dict[k] for k in out_keys]
    grad_list = [grad_dict[k] for k in model_keys]

    pred = wb_attacker_forward(params, label, loss, out_list, grad_list)
    prob = wb_attacker_predict(params, label, loss, out_list, grad_list)
    jax.block_until_ready(pred)
    jax.block_until_ready(prob)
    assert pred.shape == (batch, 1)
    assert prob.shape == (batch, 1)
    print("KERNEL_OK")
</pallas_src>

<mosaic_0001>
module attributes {stable_mosaic.version = 11 : i64} {
  func.func @_wb_fused_kernel(%arg0: memref<6x8x32xf32, #tpu.memory_space<vmem>>, %arg1: memref<6x32x128xbf16, #tpu.memory_space<vmem>>, %arg2: memref<6x1x128xf32, #tpu.memory_space<vmem>>, %arg3: memref<6x128x128xbf16, #tpu.memory_space<vmem>>, %arg4: memref<6x1x128xf32, #tpu.memory_space<vmem>>, %arg5: memref<2x128x128xbf16, #tpu.memory_space<vmem>>, %arg6: memref<2x1x128xf32, #tpu.memory_space<vmem>>, %arg7: memref<384x256xbf16, #tpu.memory_space<vmem>>, %arg8: memref<512x128xbf16, #tpu.memory_space<vmem>>, %arg9: memref<4x256xf32, #tpu.memory_space<vmem>>, %arg10: memref<2x1xf32, #tpu.memory_space<vmem>>) attributes {dimension_semantics = [], scalar_prefetch = 0 : i64, scratch_operands = 0 : i64, tpu.core_type = #tpu.core_type<tc>} {
    %c0 = arith.constant 0 : index
    %c0_0 = arith.constant 0 : index
    %c0_1 = arith.constant 0 : index
    %0 = vector.load %arg0[%c0, %c0_0, %c0_1] : memref<6x8x32xf32, #tpu.memory_space<vmem>>, vector<1x8x32xf32>
    %1 = vector.shape_cast %0 : vector<1x8x32xf32> to vector<8x32xf32>
    %c0_2 = arith.constant 0 : index
    %c0_3 = arith.constant 0 : index
    %c0_4 = arith.constant 0 : index
    %2 = vector.load %arg1[%c0_2, %c0_3, %c0_4] : memref<6x32x128xbf16, #tpu.memory_space<vmem>>, vector<1x32x128xbf16>
    %3 = vector.shape_cast %2 : vector<1x32x128xbf16> to vector<32x128xbf16>
    %c0_5 = arith.constant 0 : index
    %c0_6 = arith.constant 0 : index
    %c0_7 = arith.constant 0 : index
    %4 = vector.load %arg2[%c0_5, %c0_6, %c0_7] : memref<6x1x128xf32, #tpu.memory_space<vmem>>, vector<1x1x128xf32>
    %5 = vector.shape_cast %4 : vector<1x1x128xf32> to vector<1x128xf32>
    %6 = arith.truncf %1 : vector<8x32xf32> to vector<8x32xbf16>
    %cst = arith.constant dense<0.000000e+00> : vector<8x128xf32>
    %7 = tpu.matmul %6, %3, %cst {dimension_numbers = #tpu.dot_dimension_numbers<[1], [0], [0], [1], [0, 0, 1, 1], [], []>} : vector<8x32xbf16>, vector<32x128xbf16>, vector<8x128xf32> -> vector<8x128xf32>
    %8 = vector.broadcast %5 : vector<1x128xf32> to vector<8x128xf32>
    %9 = arith.addf %7, %8 : vector<8x128xf32>
    %cst_8 = arith.constant 0.000000e+00 : f32
    %10 = vector.broadcast %cst_8 : f32 to vector<8x128xf32>
    %11 = arith.maximumf %9, %10 : vector<8x128xf32>
    %c0_9 = arith.constant 0 : index
    %c0_10 = arith.constant 0 : index
    %c0_11 = arith.constant 0 : index
    %12 = vector.load %arg3[%c0_9, %c0_10, %c0_11] : memref<6x128x128xbf16, #tpu.memory_space<vmem>>, vector<1x128x128xbf16>
    %13 = vector.shape_cast %12 : vector<1x128x128xbf16> to vector<128x128xbf16>
    %c0_12 = arith.constant 0 : index
    %c0_13 = arith.constant 0 : index
    %c0_14 = arith.constant 0 : index
    %14 = vector.load %arg4[%c0_12, %c0_13, %c0_14] : memref<6x1x128xf32, #tpu.memory_space<vmem>>, vector<1x1x128xf32>
    %15 = vector.shape_cast %14 : vector<1x1x128xf32> to vector<1x128xf32>
    %16 = arith.truncf %11 : vector<8x128xf32> to vector<8x128xbf16>
    %cst_15 = arith.constant dense<0.000000e+00> : vector<8x128xf32>
    %17 = tpu.matmul %16, %13, %cst_15 {dimension_numbers = #tpu.dot_dimension_numbers<[1], [0], [0], [1], [0, 0, 1, 1], [], []>} : vector<8x128xbf16>, vector<128x128xbf16>, vector<8x128xf32> -> vector<8x128xf32>
    %18 = vector.broadcast %15 : vector<1x128xf32> to vector<8x128xf32>
    %19 = arith.addf %17, %18 : vector<8x128xf32>
    %cst_16 = arith.constant 0.000000e+00 : f32
    %20 = vector.broadcast %cst_16 : f32 to vector<8x128xf32>
    %21 = arith.maximumf %19, %20 : vector<8x128xf32>
    %c1 = arith.constant 1 : index
    %c0_17 = arith.constant 0 : index
    %c0_18 = arith.constant 0 : index
    %22 = vector.load %arg0[%c1, %c0_17, %c0_18] : memref<6x8x32xf32, #tpu.memory_space<vmem>>, vector<1x8x32xf32>
    %23 = vector.shape_cast %22 : vector<1x8x32xf32> to vector<8x32xf32>
    %c1_19 = arith.constant 1 : index
    %c0_20 = arith.constant 0 : index
    %c0_21 = arith.constant 0 : index
    %24 = vector.load %arg1[%c1_19, %c0_20, %c0_21] : memref<6x32x128xbf16, #tpu.memory_space<vmem>>, vector<1x32x128xbf16>
    %25 = vector.shape_cast %24 : vector<1x32x128xbf16> to vector<32x128xbf16>
    %c1_22 = arith.constant 1 : index
    %c0_23 = arith.constant 0 : index
    %c0_24 = arith.constant 0 : index
    %26 = vector.load %arg2[%c1_22, %c0_23, %c0_24] : memref<6x1x128xf32, #tpu.memory_space<vmem>>, vector<1x1x128xf32>
    %27 = vector.shape_cast %26 : vector<1x1x128xf32> to vector<1x128xf32>
    %28 = arith.truncf %23 : vector<8x32xf32> to vector<8x32xbf16>
    %cst_25 = arith.constant dense<0.000000e+00> : vector<8x128xf32>
    %29 = tpu.matmul %28, %25, %cst_25 {dimension_numbers = #tpu.dot_dimension_numbers<[1], [0], [0], [1], [0, 0, 1, 1], [], []>} : vector<8x32xbf16>, vector<32x128xbf16>, vector<8x128xf32> -> vector<8x128xf32>
    %30 = vector.broadcast %27 : vector<1x128xf32> to vector<8x128xf32>
    %31 = arith.addf %29, %30 : vector<8x128xf32>
    %cst_26 = arith.constant 0.000000e+00 : f32
    %32 = vector.broadcast %cst_26 : f32 to vector<8x128xf32>
    %33 = arith.maximumf %31, %32 : vector<8x128xf32>
    %c1_27 = arith.constant 1 : index
    %c0_28 = arith.constant 0 : index
    %c0_29 = arith.constant 0 : index
    %34 = vector.load %arg3[%c1_27, %c0_28, %c0_29] : memref<6x128x128xbf16, #tpu.memory_space<vmem>>, vector<1x128x128xbf16>
    %35 = vector.shape_cast %34 : vector<1x128x128xbf16> to vector<128x128xbf16>
    %c1_30 = arith.constant 1 : index
    %c0_31 = arith.constant 0 : index
    %c0_32 = arith.constant 0 : index
    %36 = vector.load %arg4[%c1_30, %c0_31, %c0_32] : memref<6x1x128xf32, #tpu.memory_space<vmem>>, vector<1x1x128xf32>
    %37 = vector.shape_cast %36 : vector<1x1x128xf32> to vector<1x128xf32>
    %38 = arith.truncf %33 : vector<8x128xf32> to vector<8x128xbf16>
    %cst_33 = arith.constant dense<0.000000e+00> : vector<8x128xf32>
    %39 = tpu.matmul %38, %35, %cst_33 {dimension_numbers = #tpu.dot_dimension_numbers<[1], [0], [0], [1], [0, 0, 1, 1], [], []>} : vector<8x128xbf16>, vector<128x128xbf16>, vector<8x128xf32> -> vector<8x128xf32>
    %40 = vector.broadcast %37 : vector<1x128xf32> to vector<8x128xf32>
    %41 = arith.addf %39, %40 : vector<8x128xf32>
    %cst_34 = arith.constant 0.000000e+00 : f32
    %42 = vector.broadcast %cst_34 : f32 to vector<8x128xf32>
    %43 = arith.maximumf %41, %42 : vector<8x128xf32>
    %44 = arith.addf %21, %43 : vector<8x128xf32>
    %45 = arith.truncf %44 : vector<8x128xf32> to vector<8x128xbf16>
    %c0_35 = arith.constant 0 : index
    %c0_36 = arith.constant 0 : index
    %46 = vector.load %arg7[%c0_35, %c0_36] : memref<384x256xbf16, #tpu.memory_space<vmem>>, vector<128x256xbf16>
    %cst_37 = arith.constant dense<0.000000e+00> : vector<8x256xf32>
    %47 = tpu.matmul %45, %46, %cst_37 {dimension_numbers = #tpu.dot_dimension_numbers<[1], [0], [0], [1], [0, 0, 1, 1], [], []>} : vector<8x128xbf16>, vector<128x256xbf16>, vector<8x256xf32> -> vector<8x256xf32>
    %c2 = arith.constant 2 : index
    %c0_38 = arith.constant 0 : index
    %c0_39 = arith.constant 0 : index
    %48 = vector.load %arg0[%c2, %c0_38, %c0_39] : memref<6x8x32xf32, #tpu.memory_space<vmem>>, vector<1x8x32xf32>
    %49 = vector.shape_cast %48 : vector<1x8x32xf32> to vector<8x32xf32>
    %c2_40 = arith.constant 2 : index
    %c0_41 = arith.constant 0 : index
    %c0_42 = arith.constant 0 : index
    %50 = vector.load %arg1[%c2_40, %c0_41, %c0_42] : memref<6x32x128xbf16, #tpu.memory_space<vmem>>, vector<1x32x128xbf16>
    %51 = vector.shape_cast %50 : vector<1x32x128xbf16> to vector<32x128xbf16>
    %c2_43 = arith.constant 2 : index
    %c0_44 = arith.constant 0 : index
    %c0_45 = arith.constant 0 : index
    %52 = vector.load %arg2[%c2_43, %c0_44, %c0_45] : memref<6x1x128xf32, #tpu.memory_space<vmem>>, vector<1x1x128xf32>
    %53 = vector.shape_cast %52 : vector<1x1x128xf32> to vector<1x128xf32>
    %54 = arith.truncf %49 : vector<8x32xf32> to vector<8x32xbf16>
    %cst_46 = arith.constant dense<0.000000e+00> : vector<8x128xf32>
    %55 = tpu.matmul %54, %51, %cst_46 {dimension_numbers = #tpu.dot_dimension_numbers<[1], [0], [0], [1], [0, 0, 1, 1], [], []>} : vector<8x32xbf16>, vector<32x128xbf16>, vector<8x128xf32> -> vector<8x128xf32>
    %56 = vector.broadcast %53 : vector<1x128xf32> to vector<8x128xf32>
    %57 = arith.addf %55, %56 : vector<8x128xf32>
    %cst_47 = arith.constant 0.000000e+00 : f32
    %58 = vector.broadcast %cst_47 : f32 to vector<8x128xf32>
    %59 = arith.maximumf %57, %58 : vector<8x128xf32>
    %c2_48 = arith.constant 2 : index
    %c0_49 = arith.constant 0 : index
    %c0_50 = arith.constant 0 : index
    %60 = vector.load %arg3[%c2_48, %c0_49, %c0_50] : memref<6x128x128xbf16, #tpu.memory_space<vmem>>, vector<1x128x128xbf16>
    %61 = vector.shape_cast %60 : vector<1x128x128xbf16> to vector<128x128xbf16>
    %c2_51 = arith.constant 2 : index
    %c0_52 = arith.constant 0 : index
    %c0_53 = arith.constant 0 : index
    %62 = vector.load %arg4[%c2_51, %c0_52, %c0_53] : memref<6x1x128xf32, #tpu.memory_space<vmem>>, vector<1x1x128xf32>
    %63 = vector.shape_cast %62 : vector<1x1x128xf32> to vector<1x128xf32>
    %64 = arith.truncf %59 : vector<8x128xf32> to vector<8x128xbf16>
    %cst_54 = arith.constant dense<0.000000e+00> : vector<8x128xf32>
    %65 = tpu.matmul %64, %61, %cst_54 {dimension_numbers = #tpu.dot_dimension_numbers<[1], [0], [0], [1], [0, 0, 1, 1], [], []>} : vector<8x128xbf16>, vector<128x128xbf16>, vector<8x128xf32> -> vector<8x128xf32>
    %66 = vector.broadcast %63 : vector<1x128xf32> to vector<8x128xf32>
    %67 = arith.addf %65, %66 : vector<8x128xf32>
    %cst_55 = arith.constant 0.000000e+00 : f32
    %68 = vector.broadcast %cst_55 : f32 to vector<8x128xf32>
    %69 = arith.maximumf %67, %68 : vector<8x128xf32>
    %c3 = arith.constant 3 : index
    %c0_56 = arith.constant 0 : index
    %c0_57 = arith.constant 0 : index
    %70 = vector.load %arg0[%c3, %c0_56, %c0_57] : memref<6x8x32xf32, #tpu.memory_space<vmem>>, vector<1x8x32xf32>
    %71 = vector.shape_cast %70 : vector<1x8x32xf32> to vector<8x32xf32>
    %c3_58 = arith.constant 3 : index
    %c0_59 = arith.constant 0 : index
    %c0_60 = arith.constant 0 : index
    %72 = vector.load %arg1[%c3_58, %c0_59, %c0_60] : memref<6x32x128xbf16, #tpu.memory_space<vmem>>, vector<1x32x128xbf16>
    %73 = vector.shape_cast %72 : vector<1x32x128xbf16> to vector<32x128xbf16>
    %c3_61 = arith.constant 3 : index
    %c0_62 = arith.constant 0 : index
    %c0_63 = arith.constant 0 : index
    %74 = vector.load %arg2[%c3_61, %c0_62, %c0_63] : memref<6x1x128xf32, #tpu.memory_space<vmem>>, vector<1x1x128xf32>
    %75 = vector.shape_cast %74 : vector<1x1x128xf32> to vector<1x128xf32>
    %76 = arith.truncf %71 : vector<8x32xf32> to vector<8x32xbf16>
    %cst_64 = arith.constant dense<0.000000e+00> : vector<8x128xf32>
    %77 = tpu.matmul %76, %73, %cst_64 {dimension_numbers = #tpu.dot_dimension_numbers<[1], [0], [0], [1], [0, 0, 1, 1], [], []>} : vector<8x32xbf16>, vector<32x128xbf16>, vector<8x128xf32> -> vector<8x128xf32>
    %78 = vector.broadcast %75 : vector<1x128xf32> to vector<8x128xf32>
    %79 = arith.addf %77, %78 : vector<8x128xf32>
    %cst_65 = arith.constant 0.000000e+00 : f32
    %80 = vector.broadcast %cst_65 : f32 to vector<8x128xf32>
    %81 = arith.maximumf %79, %80 : vector<8x128xf32>
    %c3_66 = arith.constant 3 : index
    %c0_67 = arith.constant 0 : index
    %c0_68 = arith.constant 0 : index
    %82 = vector.load %arg3[%c3_66, %c0_67, %c0_68] : memref<6x128x128xbf16, #tpu.memory_space<vmem>>, vector<1x128x128xbf16>
    %83 = vector.shape_cast %82 : vector<1x128x128xbf16> to vector<128x128xbf16>
    %c3_69 = arith.constant 3 : index
    %c0_70 = arith.constant 0 : index
    %c0_71 = arith.constant 0 : index
    %84 = vector.load %arg4[%c3_69, %c0_70, %c0_71] : memref<6x1x128xf32, #tpu.memory_space<vmem>>, vector<1x1x128xf32>
    %85 = vector.shape_cast %84 : vector<1x1x128xf32> to vector<1x128xf32>
    %86 = arith.truncf %81 : vector<8x128xf32> to vector<8x128xbf16>
    %cst_72 = arith.constant dense<0.000000e+00> : vector<8x128xf32>
    %87 = tpu.matmul %86, %83, %cst_72 {dimension_numbers = #tpu.dot_dimension_numbers<[1], [0], [0], [1], [0, 0, 1, 1], [], []>} : vector<8x128xbf16>, vector<128x128xbf16>, vector<8x128xf32> -> vector<8x128xf32>
    %88 = vector.broadcast %85 : vector<1x128xf32> to vector<8x128xf32>
    %89 = arith.addf %87, %88 : vector<8x128xf32>
    %cst_73 = arith.constant 0.000000e+00 : f32
    %90 = vector.broadcast %cst_73 : f32 to vector<8x128xf32>
    %91 = arith.maximumf %89, %90 : vector<8x128xf32>
    %92 = arith.addf %69, %91 : vector<8x128xf32>
    %93 = arith.truncf %92 : vector<8x128xf32> to vector<8x128xbf16>
    %c128 = arith.constant 128 : index
    %c0_74 = arith.constant 0 : index
    %94 = vector.load %arg7[%c128, %c0_74] : memref<384x256xbf16, #tpu.memory_space<vmem>>, vector<128x256xbf16>
    %cst_75 = arith.constant dense<0.000000e+00> : vector<8x256xf32>
    %95 = tpu.matmul %93, %94, %cst_75 {dimension_numbers = #tpu.dot_dimension_numbers<[1], [0], [0], [1], [0, 0, 1, 1], [], []>} : vector<8x128xbf16>, vector<128x256xbf16>, vector<8x256xf32> -> vector<8x256xf32>
    %96 = arith.addf %47, %95 : vector<8x256xf32>
    %c4 = arith.constant 4 : index
    %c0_76 = arith.constant 0 : index
    %c0_77 = arith.constant 0 : index
    %97 = vector.load %arg0[%c4, %c0_76, %c0_77] : memref<6x8x32xf32, #tpu.memory_space<vmem>>, vector<1x8x32xf32>
    %98 = vector.shape_cast %97 : vector<1x8x32xf32> to vector<8x32xf32>
    %c4_78 = arith.constant 4 : index
    %c0_79 = arith.constant 0 : index
    %c0_80 = arith.constant 0 : index
    %99 = vector.load %arg1[%c4_78, %c0_79, %c0_80] : memref<6x32x128xbf16, #tpu.memory_space<vmem>>, vector<1x32x128xbf16>
    %100 = vector.shape_cast %99 : vector<1x32x128xbf16> to vector<32x128xbf16>
    %c4_81 = arith.constant 4 : index
    %c0_82 = arith.constant 0 : index
    %c0_83 = arith.constant 0 : index
    %101 = vector.load %arg2[%c4_81, %c0_82, %c0_83] : memref<6x1x128xf32, #tpu.memory_space<vmem>>, vector<1x1x128xf32>
    %102 = vector.shape_cast %101 : vector<1x1x128xf32> to vector<1x128xf32>
    %103 = arith.truncf %98 : vector<8x32xf32> to vector<8x32xbf16>
    %cst_84 = arith.constant dense<0.000000e+00> : vector<8x128xf32>
    %104 = tpu.matmul %103, %100, %cst_84 {dimension_numbers = #tpu.dot_dimension_numbers<[1], [0], [0], [1], [0, 0, 1, 1], [], []>} : vector<8x32xbf16>, vector<32x128xbf16>, vector<8x128xf32> -> vector<8x128xf32>
    %105 = vector.broadcast %102 : vector<1x128xf32> to vector<8x128xf32>
    %106 = arith.addf %104, %105 : vector<8x128xf32>
    %cst_85 = arith.constant 0.000000e+00 : f32
    %107 = vector.broadcast %cst_85 : f32 to vector<8x128xf32>
    %108 = arith.maximumf %106, %107 : vector<8x128xf32>
    %c4_86 = arith.constant 4 : index
    %c0_87 = arith.constant 0 : index
    %c0_88 = arith.constant 0 : index
    %109 = vector.load %arg3[%c4_86, %c0_87, %c0_88] : memref<6x128x128xbf16, #tpu.memory_space<vmem>>, vector<1x128x128xbf16>
    %110 = vector.shape_cast %109 : vector<1x128x128xbf16> to vector<128x128xbf16>
    %c4_89 = arith.constant 4 : index
    %c0_90 = arith.constant 0 : index
    %c0_91 = arith.constant 0 : index
    %111 = vector.load %arg4[%c4_89, %c0_90, %c0_91] : memref<6x1x128xf32, #tpu.memory_space<vmem>>, vector<1x1x128xf32>
    %112 = vector.shape_cast %111 : vector<1x1x128xf32> to vector<1x128xf32>
    %113 = arith.truncf %108 : vector<8x128xf32> to vector<8x128xbf16>
    %cst_92 = arith.constant dense<0.000000e+00> : vector<8x128xf32>
    %114 = tpu.matmul %113, %110, %cst_92 {dimension_numbers = #tpu.dot_dimension_numbers<[1], [0], [0], [1], [0, 0, 1, 1], [], []>} : vector<8x128xbf16>, vector<128x128xbf16>, vector<8x128xf32> -> vector<8x128xf32>
    %115 = vector.broadcast %112 : vector<1x128xf32> to vector<8x128xf32>
    %116 = arith.addf %114, %115 : vector<8x128xf32>
    %cst_93 = arith.constant 0.000000e+00 : f32
    %117 = vector.broadcast %cst_93 : f32 to vector<8x128xf32>
    %118 = arith.maximumf %116, %117 : vector<8x128xf32>
    %c0_94 = arith.constant 0 : index
    %c0_95 = arith.constant 0 : index
    %c0_96 = arith.constant 0 : index
    %119 = vector.load %arg5[%c0_94, %c0_95, %c0_96] : memref<2x128x128xbf16, #tpu.memory_space<vmem>>, vector<1x128x128xbf16>
    %120 = vector.shape_cast %119 : vector<1x128x128xbf16> to vector<128x128xbf16>
    %c0_97 = arith.constant 0 : index
    %c0_98 = arith.constant 0 : index
    %c0_99 = arith.constant 0 : index
    %121 = vector.load %arg6[%c0_97, %c0_98, %c0_99] : memref<2x1x128xf32, #tpu.memory_space<vmem>>, vector<1x1x128xf32>
    %122 = vector.shape_cast %121 : vector<1x1x128xf32> to vector<1x128xf32>
    %123 = arith.truncf %118 : vector<8x128xf32> to vector<8x128xbf16>
    %cst_100 = arith.constant dense<0.000000e+00> : vector<8x128xf32>
    %124 = tpu.matmul %123, %120, %cst_100 {dimension_numbers = #tpu.dot_dimension_numbers<[1], [0], [0], [1], [0, 0, 1, 1], [], []>} : vector<8x128xbf16>, vector<128x128xbf16>, vector<8x128xf32> -> vector<8x128xf32>
    %125 = vector.broadcast %122 : vector<1x128xf32> to vector<8x128xf32>
    %126 = arith.addf %124, %125 : vector<8x128xf32>
    %cst_101 = arith.constant 0.000000e+00 : f32
    %127 = vector.broadcast %cst_101 : f32 to vector<8x128xf32>
    %128 = arith.maximumf %126, %127 : vector<8x128xf32>
    %c5 = arith.constant 5 : index
    %c0_102 = arith.constant 0 : index
    %c0_103 = arith.constant 0 : index
    %129 = vector.load %arg0[%c5, %c0_102, %c0_103] : memref<6x8x32xf32, #tpu.memory_space<vmem>>, vector<1x8x32xf32>
    %130 = vector.shape_cast %129 : vector<1x8x32xf32> to vector<8x32xf32>
    %c5_104 = arith.constant 5 : index
    %c0_105 = arith.constant 0 : index
    %c0_106 = arith.constant 0 : index
    %131 = vector.load %arg1[%c5_104, %c0_105, %c0_106] : memref<6x32x128xbf16, #tpu.memory_space<vmem>>, vector<1x32x128xbf16>
    %132 = vector.shape_cast %131 : vector<1x32x128xbf16> to vector<32x128xbf16>
    %c5_107 = arith.constant 5 : index
    %c0_108 = arith.constant 0 : index
    %c0_109 = arith.constant 0 : index
    %133 = vector.load %arg2[%c5_107, %c0_108, %c0_109] : memref<6x1x128xf32, #tpu.memory_space<vmem>>, vector<1x1x128xf32>
    %134 = vector.shape_cast %133 : vector<1x1x128xf32> to vector<1x128xf32>
    %135 = arith.truncf %130 : vector<8x32xf32> to vector<8x32xbf16>
    %cst_110 = arith.constant dense<0.000000e+00> : vector<8x128xf32>
    %136 = tpu.matmul %135, %132, %cst_110 {dimension_numbers = #tpu.dot_dimension_numbers<[1], [0], [0], [1], [0, 0, 1, 1], [], []>} : vector<8x32xbf16>, vector<32x128xbf16>, vector<8x128xf32> -> vector<8x128xf32>
    %137 = vector.broadcast %134 : vector<1x128xf32> to vector<8x128xf32>
    %138 = arith.addf %136, %137 : vector<8x128xf32>
    %cst_111 = arith.constant 0.000000e+00 : f32
    %139 = vector.broadcast %cst_111 : f32 to vector<8x128xf32>
    %140 = arith.maximumf %138, %139 : vector<8x128xf32>
    %c5_112 = arith.constant 5 : index
    %c0_113 = arith.constant 0 : index
    %c0_114 = arith.constant 0 : index
    %141 = vector.load %arg3[%c5_112, %c0_113, %c0_114] : memref<6x128x128xbf16, #tpu.memory_space<vmem>>, vector<1x128x128xbf16>
    %142 = vector.shape_cast %141 : vector<1x128x128xbf16> to vector<128x128xbf16>
    %c5_115 = arith.constant 5 : index
    %c0_116 = arith.constant 0 : index
    %c0_117 = arith.constant 0 : index
    %143 = vector.load %arg4[%c5_115, %c0_116, %c0_117] : memref<6x1x128xf32, #tpu.memory_space<vmem>>, vector<1x1x128xf32>
    %144 = vector.shape_cast %143 : vector<1x1x128xf32> to vector<1x128xf32>
    %145 = arith.truncf %140 : vector<8x128xf32> to vector<8x128xbf16>
    %cst_118 = arith.constant dense<0.000000e+00> : vector<8x128xf32>
    %146 = tpu.matmul %145, %142, %cst_118 {dimension_numbers = #tpu.dot_dimension_numbers<[1], [0], [0], [1], [0, 0, 1, 1], [], []>} : vector<8x128xbf16>, vector<128x128xbf16>, vector<8x128xf32> -> vector<8x128xf32>
    %147 = vector.broadcast %144 : vector<1x128xf32> to vector<8x128xf32>
    %148 = arith.addf %146, %147 : vector<8x128xf32>
    %cst_119 = arith.constant 0.000000e+00 : f32
    %149 = vector.broadcast %cst_119 : f32 to vector<8x128xf32>
    %150 = arith.maximumf %148, %149 : vector<8x128xf32>
    %c1_120 = arith.constant 1 : index
    %c0_121 = arith.constant 0 : index
    %c0_122 = arith.constant 0 : index
    %151 = vector.load %arg5[%c1_120, %c0_121, %c0_122] : memref<2x128x128xbf16, #tpu.memory_space<vmem>>, vector<1x128x128xbf16>
    %152 = vector.shape_cast %151 : vector<1x128x128xbf16> to vector<128x128xbf16>
    %c1_123 = arith.constant 1 : index
    %c0_124 = arith.constant 0 : index
    %c0_125 = arith.constant 0 : index
    %153 = vector.load %arg6[%c1_123, %c0_124, %c0_125] : memref<2x1x128xf32, #tpu.memory_space<vmem>>, vector<1x1x128xf32>
    %154 = vector.shape_cast %153 : vector<1x1x128xf32> to vector<1x128xf32>
    %155 = arith.truncf %150 : vector<8x128xf32> to vector<8x128xbf16>
    %cst_126 = arith.constant dense<0.000000e+00> : vector<8x128xf32>
    %156 = tpu.matmul %155, %152, %cst_126 {dimension_numbers = #tpu.dot_dimension_numbers<[1], [0], [0], [1], [0, 0, 1, 1], [], []>} : vector<8x128xbf16>, vector<128x128xbf16>, vector<8x128xf32> -> vector<8x128xf32>
    %157 = vector.broadcast %154 : vector<1x128xf32> to vector<8x128xf32>
    %158 = arith.addf %156, %157 : vector<8x128xf32>
    %cst_127 = arith.constant 0.000000e+00 : f32
    %159 = vector.broadcast %cst_127 : f32 to vector<8x128xf32>
    %160 = arith.maximumf %158, %159 : vector<8x128xf32>
    %161 = arith.addf %128, %160 : vector<8x128xf32>
    %162 = arith.truncf %161 : vector<8x128xf32> to vector<8x128xbf16>
    %c256 = arith.constant 256 : index
    %c0_128 = arith.constant 0 : index
    %163 = vector.load %arg7[%c256, %c0_128] : memref<384x256xbf16, #tpu.memory_space<vmem>>, vector<128x256xbf16>
    %cst_129 = arith.constant dense<0.000000e+00> : vector<8x256xf32>
    %164 = tpu.matmul %162, %163, %cst_129 {dimension_numbers = #tpu.dot_dimension_numbers<[1], [0], [0], [1], [0, 0, 1, 1], [], []>} : vector<8x128xbf16>, vector<128x256xbf16>, vector<8x256xf32> -> vector<8x256xf32>
    %165 = arith.addf %96, %164 : vector<8x256xf32>
    %c0_130 = arith.constant 0 : index
    %c0_131 = arith.constant 0 : index
    %166 = vector.load %arg9[%c0_130, %c0_131] : memref<4x256xf32, #tpu.memory_space<vmem>>, vector<1x256xf32>
    %167 = vector.broadcast %166 : vector<1x256xf32> to vector<8x256xf32>
    %168 = arith.addf %165, %167 : vector<8x256xf32>
    %cst_132 = arith.constant 0.000000e+00 : f32
    %169 = vector.broadcast %cst_132 : f32 to vector<8x256xf32>
    %170 = arith.maximumf %168, %169 : vector<8x256xf32>
    %c0_133 = arith.constant 0 : index
    %c0_134 = arith.constant 0 : index
    %171 = vector.load %arg8[%c0_133, %c0_134] : memref<512x128xbf16, #tpu.memory_space<vmem>>, vector<256x128xbf16>
    %c1_135 = arith.constant 1 : index
    %c0_136 = arith.constant 0 : index
    %172 = vector.load %arg9[%c1_135, %c0_136] : memref<4x256xf32, #tpu.memory_space<vmem>>, vector<1x128xf32>
    %173 = arith.truncf %170 : vector<8x256xf32> to vector<8x256xbf16>
    %cst_137 = arith.constant dense<0.000000e+00> : vector<8x128xf32>
    %174 = tpu.matmul %173, %171, %cst_137 {dimension_numbers = #tpu.dot_dimension_numbers<[1], [0], [0], [1], [0, 0, 1, 1], [], []>} : vector<8x256xbf16>, vector<256x128xbf16>, vector<8x128xf32> -> vector<8x128xf32>
    %175 = vector.broadcast %172 : vector<1x128xf32> to vector<8x128xf32>
    %176 = arith.addf %174, %175 : vector<8x128xf32>
    %cst_138 = arith.constant 0.000000e+00 : f32
    %177 = vector.broadcast %cst_138 : f32 to vector<8x128xf32>
    %178 = arith.maximumf %176, %177 : vector<8x128xf32>
    %c256_139 = arith.constant 256 : index
    %c0_140 = arith.constant 0 : index
    %179 = vector.load %arg8[%c256_139, %c0_140] : memref<512x128xbf16, #tpu.memory_space<vmem>>, vector<128x128xbf16>
    %c2_141 = arith.constant 2 : index
    %c0_142 = arith.constant 0 : index
    %180 = vector.load %arg9[%c2_141, %c0_142] : memref<4x256xf32, #tpu.memory_space<vmem>>, vector<1x128xf32>
    %181 = arith.truncf %178 : vector<8x128xf32> to vector<8x128xbf16>
    %cst_143 = arith.constant dense<0.000000e+00> : vector<8x128xf32>
    %182 = tpu.matmul %181, %179, %cst_143 {dimension_numbers = #tpu.dot_dimension_numbers<[1], [0], [0], [1], [0, 0, 1, 1], [], []>} : vector<8x128xbf16>, vector<128x128xbf16>, vector<8x128xf32> -> vector<8x128xf32>
    %183 = vector.broadcast %180 : vector<1x128xf32> to vector<8x128xf32>
    %184 = arith.addf %182, %183 : vector<8x128xf32>
    %cst_144 = arith.constant 0.000000e+00 : f32
    %185 = vector.broadcast %cst_144 : f32 to vector<8x128xf32>
    %186 = arith.maximumf %184, %185 : vector<8x128xf32>
    %c384 = arith.constant 384 : index
    %c0_145 = arith.constant 0 : index
    %187 = vector.load %arg8[%c384, %c0_145] : memref<512x128xbf16, #tpu.memory_space<vmem>>, vector<128x128xbf16>
    %c3_146 = arith.constant 3 : index
    %c0_147 = arith.constant 0 : index
    %188 = vector.load %arg9[%c3_146, %c0_147] : memref<4x256xf32, #tpu.memory_space<vmem>>, vector<1x128xf32>
    %189 = arith.truncf %186 : vector<8x128xf32> to vector<8x128xbf16>
    %cst_148 = arith.constant dense<0.000000e+00> : vector<8x128xf32>
    %190 = tpu.matmul %189, %187, %cst_148 {dimension_numbers = #tpu.dot_dimension_numbers<[1], [0], [0], [1], [0, 0, 1, 1], [], []>} : vector<8x128xbf16>, vector<128x128xbf16>, vector<8x128xf32> -> vector<8x128xf32>
    %191 = vector.broadcast %188 : vector<1x128xf32> to vector<8x128xf32>
    %192 = arith.addf %190, %191 : vector<8x128xf32>
    %193 = vector.extract_strided_slice %192 {offsets = [0, 0], sizes = [2, 1], strides = [1, 1]} : vector<8x128xf32> to vector<2x1xf32>
    %c0_149 = arith.constant 0 : index
    %c0_150 = arith.constant 0 : index
    %194 = vector.load %arg10[%c0_149, %c0_150] : memref<2x1xf32, #tpu.memory_space<vmem>>, vector<2x1xf32>
    tpu.vector_store %arg10[%c0_149, %c0_150], %193 {strides = array<i32>} : memref<2x1xf32, #tpu.memory_space<vmem>>, vector<2x1xf32>,
    return
  }
}

</mosaic_0001>

<llo_original>
// kernel: wb_attacker_forward.1
$region0: #{wb_attacker_forward.1}
  #allocation0 [shape = 'u32[]', space=smem, size = 0x4, offset = 0x4, fixed_abs, tag = 'smem constant byte address 0x4 - core index']
  #allocation1 [shape = 'u32[144,128]{1,0:T(1,128)}', space=vmem, size = 0x12000, scoped, tag = 'internal scratch']
  %s0 = inlined_call_operand.vmem [shape: f32[6,8,32], index: 0, kind: input, shape index: {}]
  %s1 = inlined_call_operand.hbm [shape: bf16[6,32,128], index: 1, kind: input, shape index: {}]
  %s2 = inlined_call_operand.vmem [shape: f32[6,1,128], index: 2, kind: input, shape index: {}]
  %s3 = inlined_call_operand.hbm [shape: bf16[6,128,128], index: 3, kind: input, shape index: {}]
  %s4 = inlined_call_operand.vmem [shape: f32[6,1,128], index: 4, kind: input, shape index: {}]
  %s5 = inlined_call_operand.vmem [shape: bf16[2,128,128], index: 5, kind: input, shape index: {}]
  %s6 = inlined_call_operand.vmem [shape: f32[2,1,128], index: 6, kind: input, shape index: {}]
  %s7 = inlined_call_operand.hbm [shape: bf16[384,256], index: 7, kind: input, shape index: {}]
  %s8 = inlined_call_operand.hbm [shape: bf16[512,128], index: 8, kind: input, shape index: {}]
  %s9 = inlined_call_operand.vmem [shape: f32[4,256], index: 9, kind: input, shape index: {}]
  %s10 = inlined_call_operand.vmem [shape: f32[2,1], index: 10, kind: output, shape index: {}]
  %s11 = sld [smem:[#allocation0]]
  $region66: #{wb_attacker_forward.1} parent=0
    _
  %s13 = ssub.s32 1, %s11
  %s14 = scalar_select 0, %s13, %s11
  $region1: #{wb_attacker_forward.1} parent=0
    #allocation2 [shape = 'u8[49152]{0}', space=vmem, size = 0xc000, scoped, tag = 'input window, operand 1, single buffered']
    #allocation3 [shape = 's32[1]{0}', space=sflag, size = 0x4, scoped, tag = 'scoped memory for wb_attacker_forward.1']
    #allocation4 [shape = 'u8[196608]{0}', space=vmem, size = 0x30000, scoped, tag = 'input window, operand 3, single buffered']
    #allocation5 [shape = 's32[1]{0}', space=sflag, size = 0x4, scoped, tag = 'scoped memory for wb_attacker_forward.1']
    #allocation6 [shape = 'u8[196608]{0}', space=vmem, size = 0x30000, scoped, tag = 'input window, operand 7, single buffered']
    #allocation7 [shape = 'u8[131072]{0}', space=vmem, size = 0x20000, scoped, tag = 'input window, operand 8, single buffered']
    #allocation8 [shape = 's32[1]{0}', space=sflag, size = 0x4, scoped, tag = 'scoped memory for wb_attacker_forward.1']
    %15 = vsyncpa [#allocation3], 0
    %16 = vsyncpa [#allocation5], 0
    %17 = vsyncpa [#allocation8], 0
    // Predicated region
    $region2: #{wb_attacker_forward.1} parent=1 // pred_check
      _
    $region3: #{wb_attacker_forward.1} parent=1 // pred_check_branch
      %19 = sbr.rel (0) target = $region5
    $region4: #{wb_attacker_forward.1} parent=1 // pred_region
      _
    $region5: #{wb_attacker_forward.1} parent=1 // pred_fallthru
      _
    // Predicated region
    $region6: #{wb_attacker_forward.1} parent=1 // pred_check
      _
    $region7: #{wb_attacker_forward.1} parent=1 // pred_check_branch
      %21 = sbr.rel (0) target = $region9
    $region8: #{wb_attacker_forward.1} parent=1 // pred_region
      %s23 = ssub.s32 1536, 1536
      %24 = vsyncadd [#allocation3], %s23
      %s25 = sshll.u32 [#allocation2], 4
      %s26 = int_to_ptr.vmem [resolvable:$true] %s25
      %31 = dma.hbm_to_vmem [thread:$0]  %s1, 1536, %s26, [#allocation3], 64, 64, 4
    $region9: #{wb_attacker_forward.1} parent=1 // pred_fallthru
      _
    // Predicated region
    $region10: #{wb_attacker_forward.1} parent=1 // pred_check
      _
    $region11: #{wb_attacker_forward.1} parent=1 // pred_check_branch
      %33 = sbr.rel (0) target = $region13
    $region12: #{wb_attacker_forward.1} parent=1 // pred_region
      _
    $region13: #{wb_attacker_forward.1} parent=1 // pred_fallthru
      _
    // Predicated region
    $region14: #{wb_attacker_forward.1} parent=1 // pred_check
      _
    $region15: #{wb_attacker_forward.1} parent=1 // pred_check_branch
      %35 = sbr.rel (0) target = $region17
    $region16: #{wb_attacker_forward.1} parent=1 // pred_region
      %s37 = ssub.s32 6144, 6144
      %38 = vsyncadd [#allocation5], %s37
      %s39 = sshll.u32 [#allocation4], 4
      %s40 = int_to_ptr.vmem [resolvable:$true] %s39
      %45 = dma.hbm_to_vmem [thread:$0]  %s3, 6144, %s40, [#allocation5], 64, 64, 4
    $region17: #{wb_attacker_forward.1} parent=1 // pred_fallthru
      _
    // Predicated region
    $region18: #{wb_attacker_forward.1} parent=1 // pred_check
      _
    $region19: #{wb_attacker_forward.1} parent=1 // pred_check_branch
      %47 = sbr.rel (0) target = $region21
    $region20: #{wb_attacker_forward.1} parent=1 // pred_region
      _
    $region21: #{wb_attacker_forward.1} parent=1 // pred_fallthru
      _
    // Predicated region
    $region22: #{wb_attacker_forward.1} parent=1 // pred_check
      _
    $region23: #{wb_attacker_forward.1} parent=1 // pred_check_branch
      %49 = sbr.rel (0) target = $region25
    $region24: #{wb_attacker_forward.1} parent=1 // pred_region
      _
    $region25: #{wb_attacker_forward.1} parent=1 // pred_fallthru
      _
    // Predicated region
    $region26: #{wb_attacker_forward.1} parent=1 // pred_check
      _
    $region27: #{wb_attacker_forward.1} parent=1 // pred_check_branch
      %51 = sbr.rel (0) target = $region29
    $region28: #{wb_attacker_forward.1} parent=1 // pred_region
      _
    $region29: #{wb_attacker_forward.1} parent=1 // pred_fallthru
      _
    // Predicated region
    $region30: #{wb_attacker_forward.1} parent=1 // pred_check
      _
    $region31: #{wb_attacker_forward.1} parent=1 // pred_check_branch
      %53 = sbr.rel (0) target = $region33
    $region32: #{wb_attacker_forward.1} parent=1 // pred_region
      %s55 = ssub.s32 6144, 6144
      %56 = vsyncadd [#allocation5], %s55
      %s57 = sshll.u32 [#allocation6], 4
      %s58 = int_to_ptr.vmem [resolvable:$true] %s57
      %63 = dma.hbm_to_vmem [thread:$0]  %s7, 6144, %s58, [#allocation5], 128, 128, 8
    $region33: #{wb_attacker_forward.1} parent=1 // pred_fallthru
      _
    // Predicated region
    $region34: #{wb_attacker_forward.1} parent=1 // pred_check
      _
    $region35: #{wb_attacker_forward.1} parent=1 // pred_check_branch
      %65 = sbr.rel (0) target = $region37
    $region36: #{wb_attacker_forward.1} parent=1 // pred_region
      %s67 = ssub.s32 4096, 4096
      %68 = vsyncadd [#allocation8], %s67
      %s69 = sshll.u32 [#allocation7], 4
      %s70 = int_to_ptr.vmem [resolvable:$true] %s69
      %75 = dma.hbm_to_vmem [thread:$0]  %s8, 4096, %s70, [#allocation8], 64, 64, 4
    $region37: #{wb_attacker_forward.1} parent=1 // pred_fallthru
      _
    // Predicated region
    $region38: #{wb_attacker_forward.1} parent=1 // pred_check
      _
    $region39: #{wb_attacker_forward.1} parent=1 // pred_check_branch
      %77 = sbr.rel (0) target = $region41
    $region40: #{wb_attacker_forward.1} parent=1 // pred_region
      _
    $region41: #{wb_attacker_forward.1} parent=1 // pred_fallthru
      _
    // Predicated region
    $region42: #{wb_attacker_forward.1} parent=1 // pred_check
      _
    $region43: #{wb_attacker_forward.1} parent=1 // pred_check_branch
      %79 = sbr.rel (0) target = $region45
    $region44: #{wb_attacker_forward.1} parent=1 // pred_region
      %80 = dma.done [#allocation3], 1536
    $region45: #{wb_attacker_forward.1} parent=1 // pred_fallthru
      _
    // Predicated region
    $region46: #{wb_attacker_forward.1} parent=1 // pred_check
      _
    $region47: #{wb_attacker_forward.1} parent=1 // pred_check_branch
      %82 = sbr.rel (0) target = $region49
    $region48: #{wb_attacker_forward.1} parent=1 // pred_region
      %83 = dma.done [#allocation5], 6144
    $region49: #{wb_attacker_forward.1} parent=1 // pred_fallthru
      _
    // Predicated region
    $region50: #{wb_attacker_forward.1} parent=1 // pred_check
      _
    $region51: #{wb_attacker_forward.1} parent=1 // pred_check_branch
      %85 = sbr.rel (0) target = $region53
    $region52: #{wb_attacker_forward.1} parent=1 // pred_region
      %86 = dma.done [#allocation5], 6144
    $region53: #{wb_attacker_forward.1} parent=1 // pred_fallthru
      _
    // Predicated region
    $region54: #{wb_attacker_forward.1} parent=1 // pred_check
      _
    $region55: #{wb_attacker_forward.1} parent=1 // pred_check_branch
      %88 = sbr.rel (0) target = $region57
    $region56: #{wb_attacker_forward.1} parent=1 // pred_region
      %89 = dma.done [#allocation8], 4096
    $region57: #{wb_attacker_forward.1} parent=1 // pred_fallthru
      _
    %v91 = vld [vmem:[%s0] sm:$0xff]
    %v92 = vld [vmem:[#allocation2] sm:$0xf]
    %v93 = vld [vmem:[#allocation2 + $0x4] sm:$0xf]
    %v94 = vld [vmem:[#allocation2 + $0x8] sm:$0xf]
    %v95 = vld [vmem:[#allocation2 + $0xc] sm:$0xf]
    %v96 = vld [vmem:[%s2] sm:$0x1]
    %v97 = vpack.c.bf16 %v91, %v91
    %v99 = vlaneseq
    %v100 = vshrl.u32 %v99, 7
    %v101 = vsub.s32 0, %v100
    %v102 = vrot.slane %v96, %v101
    %v108 = vunpack.c.l.b16 %v92
    %v109 = vunpack.c.l.b16 %v93
    %v110 = vunpack.c.l.b16 %v94
    %v111 = vunpack.c.l.b16 %v95
    %v112 = vpack.c.b16 %v109, %v108
    %v113 = vpack.c.b16 %v111, %v110
    %vm116 = vcmask 261120
    %v118 = vsel %vm116, %v97, 0
    %120 = vmatprep.subr.bf16.mxu0 0
    %121 = vmatpush1.bf16.msra.mxu0 %v112
    %122 = vmatprep.subr.bf16.mxu0 0
    %123 = vmatpush1.bf16.msra.mxu0 %v113
    %124 = vmatprep.subr.bf16.mxu0 0
    %125 = vmatpush1.bf16.msra.mxu0 0
    %126 = vmatprep.subr.bf16.mxu0 0
    %127 = vmatpush1.bf16.msra.mxu0 0
    %128 = vmatprep.subr.bf16.mxu0 0
    %129 = vmatpush1.bf16.msra.mxu0 0
    %130 = vmatprep.subr.bf16.mxu0 0
    %131 = vmatpush1.bf16.msra.mxu0 0
    %132 = vmatprep.subr.bf16.mxu0 0
    %133 = vmatpush1.bf16.msra.mxu0 0
    %134 = vmatprep.subr.bf16.mxu0 0
    %135 = vmatpush1.bf16.msra.mxu0 0
    %136 = vmatprep.subr.bf16.mxu0 0
    %137 = vmatpush1.bf16.msra.mxu0 0
    %138 = vmatprep.subr.bf16.mxu0 0
    %139 = vmatpush1.bf16.msra.mxu0 0
    %140 = vmatprep.subr.bf16.mxu0 0
    %141 = vmatpush1.bf16.msra.mxu0 0
    %142 = vmatprep.subr.bf16.mxu0 0
    %143 = vmatpush1.bf16.msra.mxu0 0
    %144 = vmatprep.subr.bf16.mxu0 0
    %145 = vmatpush1.bf16.msra.mxu0 0
    %146 = vmatprep.subr.bf16.mxu0 0
    %147 = vmatpush1.bf16.msra.mxu0 0
    %148 = vmatprep.subr.bf16.mxu0 0
    %149 = vmatpush1.bf16.msra.mxu0 0
    %150 = vmatprep.subr.bf16.mxu0 0
    %151 = vmatpush1.bf16.msra.mxu0 0
    %152 = vmatprep.mubr.bf16.mxu0 0
    %153 = vmatmul.mubr.bf16.gmra.mrb[0].mxu0 %v118
    %v154 = vpop.f32.mrb[0].mxu0
    %v155 = vadd.f32 %v102, %v154
    %v156 = vpop.f32.mrb[0].mxu0
    %v157 = vpop.f32.mrb[0].mxu0
    %v158 = vpop.f32.mrb[0].mxu0
    %159 = vdwg.mxu0
    %v160 = vmax.f32 %v155, 0.0
    %v161 = vld [vmem:[#allocation4] sm:$0xf]
    %v162 = vld [vmem:[#allocation4 + $0x4] sm:$0xf]
    %v163 = vld [vmem:[#allocation4 + $0x8] sm:$0xf]
    %v164 = vld [vmem:[#allocation4 + $0xc] sm:$0xf]
    %v165 = vld [vmem:[#allocation4 + $0x10] sm:$0xf]
    %v166 = vld [vmem:[#allocation4 + $0x14] sm:$0xf]
    %v167 = vld [vmem:[#allocation4 + $0x18] sm:$0xf]
    %v168 = vld [vmem:[#allocation4 + $0x1c] sm:$0xf]
    %v169 = vld [vmem:[#allocation4 + $0x20] sm:$0xf]
    %v170 = vld [vmem:[#allocation4 + $0x24] sm:$0xf]
    %v171 = vld [vmem:[#allocation4 + $0x28] sm:$0xf]
    %v172 = vld [vmem:[#allocation4 + $0x2c] sm:$0xf]
    %v173 = vld [vmem:[#allocation4 + $0x30] sm:$0xf]
    %v174 = vld [vmem:[#allocation4 + $0x34] sm:$0xf]
    %v175 = vld [vmem:[#allocation4 + $0x38] sm:$0xf]
    %v176 = vld [vmem:[#allocation4 + $0x3c] sm:$0xf]
    %v177 = vld [vmem:[%s4] sm:$0x1]
    %v178 = vpack.c.bf16 %v160, %v160
    %v180 = vlaneseq
    %v181 = vshrl.u32 %v180, 7
    %v182 = vsub.s32 0, %v181
    %v183 = vrot.slane %v177, %v182
    %v201 = vunpack.c.l.b16 %v161
    %v202 = vunpack.c.l.b16 %v162
    %v203 = vunpack.c.l.b16 %v163
    %v204 = vunpack.c.l.b16 %v164
    %v205 = vunpack.c.l.b16 %v165
    %v206 = vunpack.c.l.b16 %v166
    %v207 = vunpack.c.l.b16 %v167
    %v208 = vunpack.c.l.b16 %v168
    %v209 = vunpack.c.l.b16 %v169
    %v210 = vunpack.c.l.b16 %v170
    %v211 = vunpack.c.l.b16 %v171
    %v212 = vunpack.c.l.b16 %v172
    %v213 = vunpack.c.l.b16 %v173
    %v214 = vunpack.c.l.b16 %v174
    %v215 = vunpack.c.l.b16 %v175
    %v216 = vunpack.c.l.b16 %v176
    %v217 = vpack.c.b16 %v202, %v201
    %v218 = vpack.c.b16 %v204, %v203
    %v219 = vpack.c.b16 %v206, %v205
    %v220 = vpack.c.b16 %v208, %v207
    %v221 = vpack.c.b16 %v210, %v209
    %v222 = vpack.c.b16 %v212, %v211
    %v223 = vpack.c.b16 %v214, %v213
    %v224 = vpack.c.b16 %v216, %v215
    %233 = vmatprep.subr.bf16.mxu0 0
    %234 = vmatpush1.bf16.msra.mxu0 %v217
    %235 = vmatprep.subr.bf16.mxu0 0
    %236 = vmatpush1.bf16.msra.mxu0 %v218
    %237 = vmatprep.subr.bf16.mxu0 0
    %238 = vmatpush1.bf16.msra.mxu0 %v219
    %239 = vmatprep.subr.bf16.mxu0 0
    %240 = vmatpush1.bf16.msra.mxu0 %v220
    %241 = vmatprep.subr.bf16.mxu0 0
    %242 = vmatpush1.bf16.msra.mxu0 %v221
    %243 = vmatprep.subr.bf16.mxu0 0
    %244 = vmatpush1.bf16.msra.mxu0 %v222
    %245 = vmatprep.subr.bf16.mxu0 0
    %246 = vmatpush1.bf16.msra.mxu0 %v223
    %247 = vmatprep.subr.bf16.mxu0 0
    %248 = vmatpush1.bf16.msra.mxu0 %v224
    %249 = vmatprep.subr.bf16.mxu0 0
    %250 = vmatpush1.bf16.msra.mxu0 0
    %251 = vmatprep.subr.bf16.mxu0 0
    %252 = vmatpush1.bf16.msra.mxu0 0
    %253 = vmatprep.subr.bf16.mxu0 0
    %254 = vmatpush1.bf16.msra.mxu0 0
    %255 = vmatprep.subr.bf16.mxu0 0
    %256 = vmatpush1.bf16.msra.mxu0 0
    %257 = vmatprep.subr.bf16.mxu0 0
    %258 = vmatpush1.bf16.msra.mxu0 0
    %259 = vmatprep.subr.bf16.mxu0 0
    %260 = vmatpush1.bf16.msra.mxu0 0
    %261 = vmatprep.subr.bf16.mxu0 0
    %262 = vmatpush1.bf16.msra.mxu0 0
    %263 = vmatprep.subr.bf16.mxu0 0
    %264 = vmatpush1.bf16.msra.mxu0 0
    %265 = vmatprep.mubr.bf16.mxu0 0
    %266 = vmatmul.mubr.bf16.gmra.mrb[0].mxu0 %v178
    %v267 = vpop.f32.mrb[0].mxu0
    %v268 = vadd.f32 %v183, %v267
    %v269 = vpop.f32.mrb[0].mxu0
    %v270 = vpop.f32.mrb[0].mxu0
    %v271 = vpop.f32.mrb[0].mxu0
    %272 = vdwg.mxu0
    %v273 = vmax.f32 %v268, 0.0
    %s274 = scalar_lea.vmem %s0, 8
    %v275 = vld [vmem:[%s274] sm:$0xff]
    %s276 = scalar_lea.vmem [#allocation2], 16
    %v277 = vld [vmem:[%s276] sm:$0xf]
    %v278 = vld [vmem:[%s276 + $0x4] sm:$0xf]
    %v279 = vld [vmem:[%s276 + $0x8] sm:$0xf]
    %v280 = vld [vmem:[%s276 + $0xc] sm:$0xf]
    %s281 = scalar_lea.vmem %s2, 1
    %v282 = vld [vmem:[%s281] sm:$0x1]
    %v283 = vpack.c.bf16 %v275, %v275
    %v285 = vlaneseq
    %v286 = vshrl.u32 %v285, 7
    %v287 = vsub.s32 0, %v286
    %v288 = vrot.slane %v282, %v287
    %v294 = vunpack.c.l.b16 %v277
    %v295 = vunpack.c.l.b16 %v278
    %v296 = vunpack.c.l.b16 %v279
    %v297 = vunpack.c.l.b16 %v280
    %v298 = vpack.c.b16 %v295, %v294
    %v299 = vpack.c.b16 %v297, %v296
    %v303 = vsel %vm116, %v283, 0
    %305 = vmatprep.subr.bf16.mxu0 0
    %306 = vmatpush1.bf16.msra.mxu0 %v298
    %307 = vmatprep.subr.bf16.mxu0 0
    %308 = vmatpush1.bf16.msra.mxu0 %v299
    %309 = vmatprep.subr.bf16.mxu0 0
    %310 = vmatpush1.bf16.msra.mxu0 0
    %311 = vmatprep.subr.bf16.mxu0 0
    %312 = vmatpush1.bf16.msra.mxu0 0
    %313 = vmatprep.subr.bf16.mxu0 0
    %314 = vmatpush1.bf16.msra.mxu0 0
    %315 = vmatprep.subr.bf16.mxu0 0
    %316 = vmatpush1.bf16.msra.mxu0 0
    %317 = vmatprep.subr.bf16.mxu0 0
    %318 = vmatpush1.bf16.msra.mxu0 0
    %319 = vmatprep.subr.bf16.mxu0 0
    %320 = vmatpush1.bf16.msra.mxu0 0
    %321 = vmatprep.subr.bf16.mxu0 0
    %322 = vmatpush1.bf16.msra.mxu0 0
    %323 = vmatprep.subr.bf16.mxu0 0
    %324 = vmatpush1.bf16.msra.mxu0 0
    %325 = vmatprep.subr.bf16.mxu0 0
    %326 = vmatpush1.bf16.msra.mxu0 0
    %327 = vmatprep.subr.bf16.mxu0 0
    %328 = vmatpush1.bf16.msra.mxu0 0
    %329 = vmatprep.subr.bf16.mxu0 0
    %330 = vmatpush1.bf16.msra.mxu0 0
    %331 = vmatprep.subr.bf16.mxu0 0
    %332 = vmatpush1.bf16.msra.mxu0 0
    %333 = vmatprep.subr.bf16.mxu0 0
    %334 = vmatpush1.bf16.msra.mxu0 0
    %335 = vmatprep.subr.bf16.mxu0 0
    %336 = vmatpush1.bf16.msra.mxu0 0
    %337 = vmatprep.mubr.bf16.mxu0 0
    %338 = vmatmul.mubr.bf16.gmra.mrb[0].mxu0 %v303
    %v339 = vpop.f32.mrb[0].mxu0
    %v340 = vadd.f32 %v288, %v339
    %v341 = vpop.f32.mrb[0].mxu0
    %v342 = vpop.f32.mrb[0].mxu0
    %v343 = vpop.f32.mrb[0].mxu0
    %344 = vdwg.mxu0
    %v345 = vmax.f32 %v340, 0.0
    %s346 = scalar_lea.vmem [#allocation4], 64
    %v347 = vld [vmem:[%s346] sm:$0xf]
    %v348 = vld [vmem:[%s346 + $0x4] sm:$0xf]
    %v349 = vld [vmem:[%s346 + $0x8] sm:$0xf]
    %v350 = vld [vmem:[%s346 + $0xc] sm:$0xf]
    %v351 = vld [vmem:[%s346 + $0x10] sm:$0xf]
    %v352 = vld [vmem:[%s346 + $0x14] sm:$0xf]
    %v353 = vld [vmem:[%s346 + $0x18] sm:$0xf]
    %v354 = vld [vmem:[%s346 + $0x1c] sm:$0xf]
    %v355 = vld [vmem:[%s346 + $0x20] sm:$0xf]
    %v356 = vld [vmem:[%s346 + $0x24] sm:$0xf]
    %v357 = vld [vmem:[%s346 + $0x28] sm:$0xf]
    %v358 = vld [vmem:[%s346 + $0x2c] sm:$0xf]
    %v359 = vld [vmem:[%s346 + $0x30] sm:$0xf]
    %v360 = vld [vmem:[%s346 + $0x34] sm:$0xf]
    %v361 = vld [vmem:[%s346 + $0x38] sm:$0xf]
    %v362 = vld [vmem:[%s346 + $0x3c] sm:$0xf]
    %s363 = scalar_lea.vmem %s4, 1
    %v364 = vld [vmem:[%s363] sm:$0x1]
    %v365 = vpack.c.bf16 %v345, %v345
    %v367 = vlaneseq
    %v368 = vshrl.u32 %v367, 7
    %v369 = vsub.s32 0, %v368
    %v370 = vrot.slane %v364, %v369
    %v388 = vunpack.c.l.b16 %v347
    %v389 = vunpack.c.l.b16 %v348
    %v390 = vunpack.c.l.b16 %v349
    %v391 = vunpack.c.l.b16 %v350
    %v392 = vunpack.c.l.b16 %v351
    %v393 = vunpack.c.l.b16 %v352
    %v394 = vunpack.c.l.b16 %v353
    %v395 = vunpack.c.l.b16 %v354
    %v396 = vunpack.c.l.b16 %v355
    %v397 = vunpack.c.l.b16 %v356
    %v398 = vunpack.c.l.b16 %v357
    %v399 = vunpack.c.l.b16 %v358
    %v400 = vunpack.c.l.b16 %v359
    %v401 = vunpack.c.l.b16 %v360
    %v402 = vunpack.c.l.b16 %v361
    %v403 = vunpack.c.l.b16 %v362
    %v404 = vpack.c.b16 %v389, %v388
    %v405 = vpack.c.b16 %v391, %v390
    %v406 = vpack.c.b16 %v393, %v392
    %v407 = vpack.c.b16 %v395, %v394
    %v408 = vpack.c.b16 %v397, %v396
    %v409 = vpack.c.b16 %v399, %v398
    %v410 = vpack.c.b16 %v401, %v400
    %v411 = vpack.c.b16 %v403, %v402
    %420 = vmatprep.subr.bf16.mxu0 0
    %421 = vmatpush1.bf16.msra.mxu0 %v404
    %422 = vmatprep.subr.bf16.mxu0 0
    %423 = vmatpush1.bf16.msra.mxu0 %v405
    %424 = vmatprep.subr.bf16.mxu0 0
    %425 = vmatpush1.bf16.msra.mxu0 %v406
    %426 = vmatprep.subr.bf16.mxu0 0
    %427 = vmatpush1.bf16.msra.mxu0 %v407
    %428 = vmatprep.subr.bf16.mxu0 0
    %429 = vmatpush1.bf16.msra.mxu0 %v408
    %430 = vmatprep.subr.bf16.mxu0 0
    %431 = vmatpush1.bf16.msra.mxu0 %v409
    %432 = vmatprep.subr.bf16.mxu0 0
    %433 = vmatpush1.bf16.msra.mxu0 %v410
    %434 = vmatprep.subr.bf16.mxu0 0
    %435 = vmatpush1.bf16.msra.mxu0 %v411
    %436 = vmatprep.subr.bf16.mxu0 0
    %437 = vmatpush1.bf16.msra.mxu0 0
    %438 = vmatprep.subr.bf16.mxu0 0
    %439 = vmatpush1.bf16.msra.mxu0 0
    %440 = vmatprep.subr.bf16.mxu0 0
    %441 = vmatpush1.bf16.msra.mxu0 0
    %442 = vmatprep.subr.bf16.mxu0 0
    %443 = vmatpush1.bf16.msra.mxu0 0
    %444 = vmatprep.subr.bf16.mxu0 0
    %445 = vmatpush1.bf16.msra.mxu0 0
    %446 = vmatprep.subr.bf16.mxu0 0
    %447 = vmatpush1.bf16.msra.mxu0 0
    %448 = vmatprep.subr.bf16.mxu0 0
    %449 = vmatpush1.bf16.msra.mxu0 0
    %450 = vmatprep.subr.bf16.mxu0 0
    %451 = vmatpush1.bf16.msra.mxu0 0
    %452 = vmatprep.mubr.bf16.mxu0 0
    %453 = vmatmul.mubr.bf16.gmra.mrb[0].mxu0 %v365
    %v454 = vpop.f32.mrb[0].mxu0
    %v455 = vadd.f32 %v370, %v454
    %v456 = vpop.f32.mrb[0].mxu0
    %v457 = vpop.f32.mrb[0].mxu0
    %v458 = vpop.f32.mrb[0].mxu0
    %459 = vdwg.mxu0
    %v460 = vmax.f32 %v455, 0.0
    %v461 = vadd.f32 %v273, %v460
    %v462 = vpack.c.bf16 %v461, %v461
    %v463 = vld [vmem:[#allocation6] sm:$0xff]
    %v464 = vld [vmem:[#allocation6 + $0x8] sm:$0xff]
    %v465 = vld [vmem:[#allocation6 + $0x10] sm:$0xff]
    %v466 = vld [vmem:[#allocation6 + $0x18] sm:$0xff]
    %v467 = vld [vmem:[#allocation6 + $0x20] sm:$0xff]
    %v468 = vld [vmem:[#allocation6 + $0x28] sm:$0xff]
    %v469 = vld [vmem:[#allocation6 + $0x30] sm:$0xff]
    %v470 = vld [vmem:[#allocation6 + $0x38] sm:$0xff]
    %v471 = vld [vmem:[#allocation6 + $0x40] sm:$0xff]
    %v472 = vld [vmem:[#allocation6 + $0x48] sm:$0xff]
    %v473 = vld [vmem:[#allocation6 + $0x50] sm:$0xff]
    %v474 = vld [vmem:[#allocation6 + $0x58] sm:$0xff]
    %v475 = vld [vmem:[#allocation6 + $0x60] sm:$0xff]
    %v476 = vld [vmem:[#allocation6 + $0x68] sm:$0xff]
    %v477 = vld [vmem:[#allocation6 + $0x70] sm:$0xff]
    %v478 = vld [vmem:[#allocation6 + $0x78] sm:$0xff]
    %s479 = scalar_lea.vmem %s0, 16
    %v480 = vld [vmem:[%s479] sm:$0xff]
    %s481 = scalar_lea.vmem [#allocation2], 32
    %v482 = vld [vmem:[%s481] sm:$0xf]
    %v483 = vld [vmem:[%s481 + $0x4] sm:$0xf]
    %v484 = vld [vmem:[%s481 + $0x8] sm:$0xf]
    %v485 = vld [vmem:[%s481 + $0xc] sm:$0xf]
    %s486 = scalar_lea.vmem %s2, 2
    %v487 = vld [vmem:[%s486] sm:$0x1]
    %v488 = vpack.c.bf16 %v480, %v480
    %v490 = vlaneseq
    %v491 = vshrl.u32 %v490, 7
    %v492 = vsub.s32 0, %v491
    %v493 = vrot.slane %v487, %v492
    %v499 = vunpack.c.l.b16 %v482
    %v500 = vunpack.c.l.b16 %v483
    %v501 = vunpack.c.l.b16 %v484
    %v502 = vunpack.c.l.b16 %v485
    %v503 = vpack.c.b16 %v500, %v499
    %v504 = vpack.c.b16 %v502, %v501
    %v508 = vsel %vm116, %v488, 0
    %510 = vmatprep.subr.bf16.mxu0 0
    %511 = vmatpush1.bf16.msra.mxu0 %v503
    %512 = vmatprep.subr.bf16.mxu0 0
    %513 = vmatpush1.bf16.msra.mxu0 %v504
    %514 = vmatprep.subr.bf16.mxu0 0
    %515 = vmatpush1.bf16.msra.mxu0 0
    %516 = vmatprep.subr.bf16.mxu0 0
    %517 = vmatpush1.bf16.msra.mxu0 0
    %518 = vmatprep.subr.bf16.mxu0 0
    %519 = vmatpush1.bf16.msra.mxu0 0
    %520 = vmatprep.subr.bf16.mxu0 0
    %521 = vmatpush1.bf16.msra.mxu0 0
    %522 = vmatprep.subr.bf16.mxu0 0
    %523 = vmatpush1.bf16.msra.mxu0 0
    %524 = vmatprep.subr.bf16.mxu0 0
    %525 = vmatpush1.bf16.msra.mxu0 0
    %526 = vmatprep.subr.bf16.mxu0 0
    %527 = vmatpush1.bf16.msra.mxu0 0
    %528 = vmatprep.subr.bf16.mxu0 0
    %529 = vmatpush1.bf16.msra.mxu0 0
    %530 = vmatprep.subr.bf16.mxu0 0
    %531 = vmatpush1.bf16.msra.mxu0 0
    %532 = vmatprep.subr.bf16.mxu0 0
    %533 = vmatpush1.bf16.msra.mxu0 0
    %534 = vmatprep.subr.bf16.mxu0 0
    %535 = vmatpush1.bf16.msra.mxu0 0
    %536 = vmatprep.subr.bf16.mxu0 0
    %537 = vmatpush1.bf16.msra.mxu0 0
    %538 = vmatprep.subr.bf16.mxu0 0
    %539 = vmatpush1.bf16.msra.mxu0 0
    %540 = vmatprep.subr.bf16.mxu0 0
    %541 = vmatpush1.bf16.msra.mxu0 0
    %542 = vmatprep.mubr.bf16.mxu0 0
    %543 = vmatmul.mubr.bf16.gmra.mrb[0].mxu0 %v508
    %v544 = vpop.f32.mrb[0].mxu0
    %v545 = vadd.f32 %v493, %v544
    %v546 = vpop.f32.mrb[0].mxu0
    %v547 = vpop.f32.mrb[0].mxu0
    %v548 = vpop.f32.mrb[0].mxu0
    %549 = vdwg.mxu0
    %v550 = vmax.f32 %v545, 0.0
    %s551 = scalar_lea.vmem [#allocation4], 128
    %v552 = vld [vmem:[%s551] sm:$0xf]
    %v553 = vld [vmem:[%s551 + $0x4] sm:$0xf]
    %v554 = vld [vmem:[%s551 + $0x8] sm:$0xf]
    %v555 = vld [vmem:[%s551 + $0xc] sm:$0xf]
    %v556 = vld [vmem:[%s551 + $0x10] sm:$0xf]
    %v557 = vld [vmem:[%s551 + $0x14] sm:$0xf]
    %v558 = vld [vmem:[%s551 + $0x18] sm:$0xf]
    %v559 = vld [vmem:[%s551 + $0x1c] sm:$0xf]
    %v560 = vld [vmem:[%s551 + $0x20] sm:$0xf]
    %v561 = vld [vmem:[%s551 + $0x24] sm:$0xf]
    %v562 = vld [vmem:[%s551 + $0x28] sm:$0xf]
    %v563 = vld [vmem:[%s551 + $0x2c] sm:$0xf]
    %v564 = vld [vmem:[%s551 + $0x30] sm:$0xf]
    %v565 = vld [vmem:[%s551 + $0x34] sm:$0xf]
    %v566 = vld [vmem:[%s551 + $0x38] sm:$0xf]
    %v567 = vld [vmem:[%s551 + $0x3c] sm:$0xf]
    %s568 = scalar_lea.vmem %s4, 2
    %v569 = vld [vmem:[%s568] sm:$0x1]
    %v570 = vpack.c.bf16 %v550, %v550
    %v572 = vlaneseq
    %v573 = vshrl.u32 %v572, 7
    %v574 = vsub.s32 0, %v573
    %v575 = vrot.slane %v569, %v574
    %v593 = vunpack.c.l.b16 %v552
    %v594 = vunpack.c.l.b16 %v553
    %v595 = vunpack.c.l.b16 %v554
    %v596 = vunpack.c.l.b16 %v555
    %v597 = vunpack.c.l.b16 %v556
    %v598 = vunpack.c.l.b16 %v557
    %v599 = vunpack.c.l.b16 %v558
    %v600 = vunpack.c.l.b16 %v559
    %v601 = vunpack.c.l.b16 %v560
    %v602 = vunpack.c.l.b16 %v561
    %v603 = vunpack.c.l.b16 %v562
    %v604 = vunpack.c.l.b16 %v563
    %v605 = vunpack.c.l.b16 %v564
    %v606 = vunpack.c.l.b16 %v565
    %v607 = vunpack.c.l.b16 %v566
    %v608 = vunpack.c.l.b16 %v567
    %v609 = vpack.c.b16 %v594, %v593
    %v610 = vpack.c.b16 %v596, %v595
    %v611 = vpack.c.b16 %v598, %v597
    %v612 = vpack.c.b16 %v600, %v599
    %v613 = vpack.c.b16 %v602, %v601
    %v614 = vpack.c.b16 %v604, %v603
    %v615 = vpack.c.b16 %v606, %v605
    %v616 = vpack.c.b16 %v608, %v607
    %625 = vmatprep.subr.bf16.mxu0 0
    %626 = vmatpush1.bf16.msra.mxu0 %v609
    %627 = vmatprep.subr.bf16.mxu0 0
    %628 = vmatpush1.bf16.msra.mxu0 %v610
    %629 = vmatprep.subr.bf16.mxu0 0
    %630 = vmatpush1.bf16.msra.mxu0 %v611
    %631 = vmatprep.subr.bf16.mxu0 0
    %632 = vmatpush1.bf16.msra.mxu0 %v612
    %633 = vmatprep.subr.bf16.mxu0 0
    %634 = vmatpush1.bf16.msra.mxu0 %v613
    %635 = vmatprep.subr.bf16.mxu0 0
    %636 = vmatpush1.bf16.msra.mxu0 %v614
    %637 = vmatprep.subr.bf16.mxu0 0
    %638 = vmatpush1.bf16.msra.mxu0 %v615
    %639 = vmatprep.subr.bf16.mxu0 0
    %640 = vmatpush1.bf16.msra.mxu0 %v616
    %641 = vmatprep.subr.bf16.mxu0 0
    %642 = vmatpush1.bf16.msra.mxu0 0
    %643 = vmatprep.subr.bf16.mxu0 0
    %644 = vmatpush1.bf16.msra.mxu0 0
    %645 = vmatprep.subr.bf16.mxu0 0
    %646 = vmatpush1.bf16.msra.mxu0 0
    %647 = vmatprep.subr.bf16.mxu0 0
    %648 = vmatpush1.bf16.msra.mxu0 0
    %649 = vmatprep.subr.bf16.mxu0 0
    %650 = vmatpush1.bf16.msra.mxu0 0
    %651 = vmatprep.subr.bf16.mxu0 0
    %652 = vmatpush1.bf16.msra.mxu0 0
    %653 = vmatprep.subr.bf16.mxu0 0
    %654 = vmatpush1.bf16.msra.mxu0 0
    %655 = vmatprep.subr.bf16.mxu0 0
    %656 = vmatpush1.bf16.msra.mxu0 0
    %657 = vmatprep.mubr.bf16.mxu0 0
    %658 = vmatmul.mubr.bf16.gmra.mrb[0].mxu0 %v570
    %v659 = vpop.f32.mrb[0].mxu0
    %v660 = vadd.f32 %v575, %v659
    %v661 = vpop.f32.mrb[0].mxu0
    %v662 = vpop.f32.mrb[0].mxu0
    %v663 = vpop.f32.mrb[0].mxu0
    %664 = vdwg.mxu0
    %v665 = vmax.f32 %v660, 0.0
    %s666 = scalar_lea.vmem %s0, 24
    %v667 = vld [vmem:[%s666] sm:$0xff]
    %s668 = scalar_lea.vmem [#allocation2], 48
    %v669 = vld [vmem:[%s668] sm:$0xf]
    %v670 = vld [vmem:[%s668 + $0x4] sm:$0xf]
    %v671 = vld [vmem:[%s668 + $0x8] sm:$0xf]
    %v672 = vld [vmem:[%s668 + $0xc] sm:$0xf]
    %s673 = scalar_lea.vmem %s2, 3
    %v674 = vld [vmem:[%s673] sm:$0x1]
    %v675 = vpack.c.bf16 %v667, %v667
    %v677 = vlaneseq
    %v678 = vshrl.u32 %v677, 7
    %v679 = vsub.s32 0, %v678
    %v680 = vrot.slane %v674, %v679
    %v686 = vunpack.c.l.b16 %v669
    %v687 = vunpack.c.l.b16 %v670
    %v688 = vunpack.c.l.b16 %v671
    %v689 = vunpack.c.l.b16 %v672
    %v690 = vpack.c.b16 %v687, %v686
    %v691 = vpack.c.b16 %v689, %v688
    %v695 = vsel %vm116, %v675, 0
    %697 = vmatprep.subr.bf16.mxu0 0
    %698 = vmatpush1.bf16.msra.mxu0 %v690
    %699 = vmatprep.subr.bf16.mxu0 0
    %700 = vmatpush1.bf16.msra.mxu0 %v691
    %701 = vmatprep.subr.bf16.mxu0 0
    %702 = vmatpush1.bf16.msra.mxu0 0
    %703 = vmatprep.subr.bf16.mxu0 0
    %704 = vmatpush1.bf16.msra.mxu0 0
    %705 = vmatprep.subr.bf16.mxu0 0
    %706 = vmatpush1.bf16.msra.mxu0 0
    %707 = vmatprep.subr.bf16.mxu0 0
    %708 = vmatpush1.bf16.msra.mxu0 0
    %709 = vmatprep.subr.bf16.mxu0 0
    %710 = vmatpush1.bf16.msra.mxu0 0
    %711 = vmatprep.subr.bf16.mxu0 0
    %712 = vmatpush1.bf16.msra.mxu0 0
    %713 = vmatprep.subr.bf16.mxu0 0
    %714 = vmatpush1.bf16.msra.mxu0 0
    %715 = vmatprep.subr.bf16.mxu0 0
    %716 = vmatpush1.bf16.msra.mxu0 0
    %717 = vmatprep.subr.bf16.mxu0 0
    %718 = vmatpush1.bf16.msra.mxu0 0
    %719 = vmatprep.subr.bf16.mxu0 0
    %720 = vmatpush1.bf16.msra.mxu0 0
    %721 = vmatprep.subr.bf16.mxu0 0
    %722 = vmatpush1.bf16.msra.mxu0 0
    %723 = vmatprep.subr.bf16.mxu0 0
    %724 = vmatpush1.bf16.msra.mxu0 0
    %725 = vmatprep.subr.bf16.mxu0 0
    %726 = vmatpush1.bf16.msra.mxu0 0
    %727 = vmatprep.subr.bf16.mxu0 0
    %728 = vmatpush1.bf16.msra.mxu0 0
    %729 = vmatprep.mubr.bf16.mxu0 0
    %730 = vmatmul.mubr.bf16.gmra.mrb[0].mxu0 %v695
    %v731 = vpop.f32.mrb[0].mxu0
    %v732 = vadd.f32 %v680, %v731
    %v733 = vpop.f32.mrb[0].mxu0
    %v734 = vpop.f32.mrb[0].mxu0
    %v735 = vpop.f32.mrb[0].mxu0
    %736 = vdwg.mxu0
    %v737 = vmax.f32 %v732, 0.0
    %s738 = scalar_lea.vmem [#allocation4], 192
    %v739 = vld [vmem:[%s738] sm:$0xf]
    %v740 = vld [vmem:[%s738 + $0x4] sm:$0xf]
    %v741 = vld [vmem:[%s738 + $0x8] sm:$0xf]
    %v742 = vld [vmem:[%s738 + $0xc] sm:$0xf]
    %v743 = vld [vmem:[%s738 + $0x10] sm:$0xf]
    %v744 = vld [vmem:[%s738 + $0x14] sm:$0xf]
    %v745 = vld [vmem:[%s738 + $0x18] sm:$0xf]
    %v746 = vld [vmem:[%s738 + $0x1c] sm:$0xf]
    %v747 = vld [vmem:[%s738 + $0x20] sm:$0xf]
    %v748 = vld [vmem:[%s738 + $0x24] sm:$0xf]
    %v749 = vld [vmem:[%s738 + $0x28] sm:$0xf]
    %v750 = vld [vmem:[%s738 + $0x2c] sm:$0xf]
    %v751 = vld [vmem:[%s738 + $0x30] sm:$0xf]
    %v752 = vld [vmem:[%s738 + $0x34] sm:$0xf]
    %v753 = vld [vmem:[%s738 + $0x38] sm:$0xf]
    %v754 = vld [vmem:[%s738 + $0x3c] sm:$0xf]
    %s755 = scalar_lea.vmem %s4, 3
    %v756 = vld [vmem:[%s755] sm:$0x1]
    %v757 = vpack.c.bf16 %v737, %v737
    %v759 = vlaneseq
    %v760 = vshrl.u32 %v759, 7
    %v761 = vsub.s32 0, %v760
    %v762 = vrot.slane %v756, %v761
    %v780 = vunpack.c.l.b16 %v739
    %v781 = vunpack.c.l.b16 %v740
    %v782 = vunpack.c.l.b16 %v741
    %v783 = vunpack.c.l.b16 %v742
    %v784 = vunpack.c.l.b16 %v743
    %v785 = vunpack.c.l.b16 %v744
    %v786 = vunpack.c.l.b16 %v745
    %v787 = vunpack.c.l.b16 %v746
    %v788 = vunpack.c.l.b16 %v747
    %v789 = vunpack.c.l.b16 %v748
    %v790 = vunpack.c.l.b16 %v749
    %v791 = vunpack.c.l.b16 %v750
    %v792 = vunpack.c.l.b16 %v751
    %v793 = vunpack.c.l.b16 %v752
    %v794 = vunpack.c.l.b16 %v753
    %v795 = vunpack.c.l.b16 %v754
    %v796 = vpack.c.b16 %v781, %v780
    %v797 = vpack.c.b16 %v783, %v782
    %v798 = vpack.c.b16 %v785, %v784
    %v799 = vpack.c.b16 %v787, %v786
    %v800 = vpack.c.b16 %v789, %v788
    %v801 = vpack.c.b16 %v791, %v790
    %v802 = vpack.c.b16 %v793, %v792
    %v803 = vpack.c.b16 %v795, %v794
    %812 = vmatprep.subr.bf16.mxu0 0
    %813 = vmatpush1.bf16.msra.mxu0 %v796
    %814 = vmatprep.subr.bf16.mxu0 0
    %815 = vmatpush1.bf16.msra.mxu0 %v797
    %816 = vmatprep.subr.bf16.mxu0 0
    %817 = vmatpush1.bf16.msra.mxu0 %v798
    %818 = vmatprep.subr.bf16.mxu0 0
    %819 = vmatpush1.bf16.msra.mxu0 %v799
    %820 = vmatprep.subr.bf16.mxu0 0
    %821 = vmatpush1.bf16.msra.mxu0 %v800
    %822 = vmatprep.subr.bf16.mxu0 0
    %823 = vmatpush1.bf16.msra.mxu0 %v801
    %824 = vmatprep.subr.bf16.mxu0 0
    %825 = vmatpush1.bf16.msra.mxu0 %v802
    %826 = vmatprep.subr.bf16.mxu0 0
    %827 = vmatpush1.bf16.msra.mxu0 %v803
    %828 = vmatprep.subr.bf16.mxu0 0
    %829 = vmatpush1.bf16.msra.mxu0 0
    %830 = vmatprep.subr.bf16.mxu0 0
    %831 = vmatpush1.bf16.msra.mxu0 0
    %832 = vmatprep.subr.bf16.mxu0 0
    %833 = vmatpush1.bf16.msra.mxu0 0
    %834 = vmatprep.subr.bf16.mxu0 0
    %835 = vmatpush1.bf16.msra.mxu0 0
    %836 = vmatprep.subr.bf16.mxu0 0
    %837 = vmatpush1.bf16.msra.mxu0 0
    %838 = vmatprep.subr.bf16.mxu0 0
    %839 = vmatpush1.bf16.msra.mxu0 0
    %840 = vmatprep.subr.bf16.mxu0 0
    %841 = vmatpush1.bf16.msra.mxu0 0
    %842 = vmatprep.subr.bf16.mxu0 0
    %843 = vmatpush1.bf16.msra.mxu0 0
    %844 = vmatprep.mubr.bf16.mxu0 0
    %845 = vmatmul.mubr.bf16.gmra.mrb[0].mxu0 %v757
    %v846 = vpop.f32.mrb[0].mxu0
    %v847 = vadd.f32 %v762, %v846
    %v848 = vpop.f32.mrb[0].mxu0
    %v849 = vpop.f32.mrb[0].mxu0
    %v850 = vpop.f32.mrb[0].mxu0
    %851 = vdwg.mxu0
    %v852 = vmax.f32 %v847, 0.0
    %v853 = vadd.f32 %v665, %v852
    %v854 = vpack.c.bf16 %v853, %v853
    %v855 = vld [vmem:[#allocation6 + $0x80] sm:$0xff]
    %v856 = vld [vmem:[#allocation6 + $0x88] sm:$0xff]
    %v857 = vld [vmem:[#allocation6 + $0x90] sm:$0xff]
    %v858 = vld [vmem:[#allocation6 + $0x98] sm:$0xff]
    %v859 = vld [vmem:[#allocation6 + $0xa0] sm:$0xff]
    %v860 = vld [vmem:[#allocation6 + $0xa8] sm:$0xff]
    %v861 = vld [vmem:[#allocation6 + $0xb0] sm:$0xff]
    %v862 = vld [vmem:[#allocation6 + $0xb8] sm:$0xff]
    %v863 = vld [vmem:[#allocation6 + $0xc0] sm:$0xff]
    %v864 = vld [vmem:[#allocation6 + $0xc8] sm:$0xff]
    %v865 = vld [vmem:[#allocation6 + $0xd0] sm:$0xff]
    %v866 = vld [vmem:[#allocation6 + $0xd8] sm:$0xff]
    %v867 = vld [vmem:[#allocation6 + $0xe0] sm:$0xff]
    %v868 = vld [vmem:[#allocation6 + $0xe8] sm:$0xff]
    %v869 = vld [vmem:[#allocation6 + $0xf0] sm:$0xff]
    %v870 = vld [vmem:[#allocation6 + $0xf8] sm:$0xff]
    %v887 = vunpack.c.l.b16 %v855
    %v888 = vunpack.c.h.b16 %v855
    %v889 = vunpack.c.l.b16 %v856
    %v890 = vunpack.c.h.b16 %v856
    %v891 = vunpack.c.l.b16 %v857
    %v892 = vunpack.c.h.b16 %v857
    %v893 = vunpack.c.l.b16 %v858
    %v894 = vunpack.c.h.b16 %v858
    %v895 = vunpack.c.l.b16 %v859
    %v896 = vunpack.c.h.b16 %v859
    %v897 = vunpack.c.l.b16 %v860
    %v898 = vunpack.c.h.b16 %v860
    %v899 = vunpack.c.l.b16 %v861
    %v900 = vunpack.c.h.b16 %v861
    %v901 = vunpack.c.l.b16 %v862
    %v902 = vunpack.c.h.b16 %v862
    %v903 = vunpack.c.l.b16 %v863
    %v904 = vunpack.c.h.b16 %v863
    %v905 = vunpack.c.l.b16 %v864
    %v906 = vunpack.c.h.b16 %v864
    %v907 = vunpack.c.l.b16 %v865
    %v908 = vunpack.c.h.b16 %v865
    %v909 = vunpack.c.l.b16 %v866
    %v910 = vunpack.c.h.b16 %v866
    %v911 = vunpack.c.l.b16 %v867
    %v912 = vunpack.c.h.b16 %v867
    %v913 = vunpack.c.l.b16 %v868
    %v914 = vunpack.c.h.b16 %v868
    %v915 = vunpack.c.l.b16 %v869
    %v916 = vunpack.c.h.b16 %v869
    %v917 = vunpack.c.l.b16 %v870
    %v918 = vunpack.c.h.b16 %v870
    %v919 = vpack.c.b16 %v889, %v887
    %v920 = vpack.c.b16 %v890, %v888
    %v921 = vpack.c.b16 %v893, %v891
    %v922 = vpack.c.b16 %v894, %v892
    %v923 = vpack.c.b16 %v897, %v895
    %v924 = vpack.c.b16 %v898, %v896
    %v925 = vpack.c.b16 %v901, %v899
    %v926 = vpack.c.b16 %v902, %v900
    %v927 = vpack.c.b16 %v905, %v903
    %v928 = vpack.c.b16 %v906, %v904
    %v929 = vpack.c.b16 %v909, %v907
    %v930 = vpack.c.b16 %v910, %v908
    %v931 = vpack.c.b16 %v913, %v911
    %v932 = vpack.c.b16 %v914, %v912
    %v933 = vpack.c.b16 %v917, %v915
    %v934 = vpack.c.b16 %v918, %v916
    %951 = vmatprep.subr.bf16.mxu0 %v920
    %952 = vmatpush1.bf16.msra.mxu0 %v919
    %953 = vmatprep.subr.bf16.mxu0 %v922
    %954 = vmatpush1.bf16.msra.mxu0 %v921
    %955 = vmatprep.subr.bf16.mxu0 %v924
    %956 = vmatpush1.bf16.msra.mxu0 %v923
    %957 = vmatprep.subr.bf16.mxu0 %v926
    %958 = vmatpush1.bf16.msra.mxu0 %v925
    %959 = vmatprep.subr.bf16.mxu0 %v928
    %960 = vmatpush1.bf16.msra.mxu0 %v927
    %961 = vmatprep.subr.bf16.mxu0 %v930
    %962 = vmatpush1.bf16.msra.mxu0 %v929
    %963 = vmatprep.subr.bf16.mxu0 %v932
    %964 = vmatpush1.bf16.msra.mxu0 %v931
    %965 = vmatprep.subr.bf16.mxu0 %v934
    %966 = vmatpush1.bf16.msra.mxu0 %v933
    %967 = vmatprep.subr.bf16.mxu0 0
    %968 = vmatpush1.bf16.msra.mxu0 0
    %969 = vmatprep.subr.bf16.mxu0 0
    %970 = vmatpush1.bf16.msra.mxu0 0
    %971 = vmatprep.subr.bf16.mxu0 0
    %972 = vmatpush1.bf16.msra.mxu0 0
    %973 = vmatprep.subr.bf16.mxu0 0
    %974 = vmatpush1.bf16.msra.mxu0 0
    %975 = vmatprep.subr.bf16.mxu0 0
    %976 = vmatpush1.bf16.msra.mxu0 0
    %977 = vmatprep.subr.bf16.mxu0 0
    %978 = vmatpush1.bf16.msra.mxu0 0
    %979 = vmatprep.subr.bf16.mxu0 0
    %980 = vmatpush1.bf16.msra.mxu0 0
    %981 = vmatprep.subr.bf16.mxu0 0
    %982 = vmatpush1.bf16.msra.mxu0 0
    %983 = vmatprep.mubr.bf16.mxu0 0
    %984 = vmatmul.mubr.bf16.gmra.mrb[0].mxu0 %v854
    %v985 = vpop.f32.mrb[0].mxu0
    %v986 = vadd.f32 0.0, %v985
    %v987 = vpop.f32.mrb[0].mxu0
    %v988 = vadd.f32 0.0, %v987
    %v989 = vpop.f32.mrb[0].mxu0
    %v990 = vpop.f32.mrb[0].mxu0
    %991 = vdwg.mxu0
    %v1008 = vunpack.c.l.b16 %v463
    %v1009 = vunpack.c.h.b16 %v463
    %v1010 = vunpack.c.l.b16 %v464
    %v1011 = vunpack.c.h.b16 %v464
    %v1012 = vunpack.c.l.b16 %v465
    %v1013 = vunpack.c.h.b16 %v465
    %v1014 = vunpack.c.l.b16 %v466
    %v1015 = vunpack.c.h.b16 %v466
    %v1016 = vunpack.c.l.b16 %v467
    %v1017 = vunpack.c.h.b16 %v467
    %v1018 = vunpack.c.l.b16 %v468
    %v1019 = vunpack.c.h.b16 %v468
    %v1020 = vunpack.c.l.b16 %v469
    %v1021 = vunpack.c.h.b16 %v469
    %v1022 = vunpack.c.l.b16 %v470
    %v1023 = vunpack.c.h.b16 %v470
    %v1024 = vunpack.c.l.b16 %v471
    %v1025 = vunpack.c.h.b16 %v471
    %v1026 = vunpack.c.l.b16 %v472
    %v1027 = vunpack.c.h.b16 %v472
    %v1028 = vunpack.c.l.b16 %v473
    %v1029 = vunpack.c.h.b16 %v473
    %v1030 = vunpack.c.l.b16 %v474
    %v1031 = vunpack.c.h.b16 %v474
    %v1032 = vunpack.c.l.b16 %v475
    %v1033 = vunpack.c.h.b16 %v475
    %v1034 = vunpack.c.l.b16 %v476
    %v1035 = vunpack.c.h.b16 %v476
    %v1036 = vunpack.c.l.b16 %v477
    %v1037 = vunpack.c.h.b16 %v477
    %v1038 = vunpack.c.l.b16 %v478
    %v1039 = vunpack.c.h.b16 %v478
    %v1040 = vpack.c.b16 %v1010, %v1008
    %v1041 = vpack.c.b16 %v1011, %v1009
    %v1042 = vpack.c.b16 %v1014, %v1012
    %v1043 = vpack.c.b16 %v1015, %v1013
    %v1044 = vpack.c.b16 %v1018, %v1016
    %v1045 = vpack.c.b16 %v1019, %v1017
    %v1046 = vpack.c.b16 %v1022, %v1020
    %v1047 = vpack.c.b16 %v1023, %v1021
    %v1048 = vpack.c.b16 %v1026, %v1024
    %v1049 = vpack.c.b16 %v1027, %v1025
    %v1050 = vpack.c.b16 %v1030, %v1028
    %v1051 = vpack.c.b16 %v1031, %v1029
    %v1052 = vpack.c.b16 %v1034, %v1032
    %v1053 = vpack.c.b16 %v1035, %v1033
    %v1054 = vpack.c.b16 %v1038, %v1036
    %v1055 = vpack.c.b16 %v1039, %v1037
    %1072 = vmatprep.subr.bf16.mxu0 %v1041
    %1073 = vmatpush1.bf16.msra.mxu0 %v1040
    %1074 = vmatprep.subr.bf16.mxu0 %v1043
    %1075 = vmatpush1.bf16.msra.mxu0 %v1042
    %1076 = vmatprep.subr.bf16.mxu0 %v1045
    %1077 = vmatpush1.bf16.msra.mxu0 %v1044
    %1078 = vmatprep.subr.bf16.mxu0 %v1047
    %1079 = vmatpush1.bf16.msra.mxu0 %v1046
    %1080 = vmatprep.subr.bf16.mxu0 %v1049
    %1081 = vmatpush1.bf16.msra.mxu0 %v1048
    %1082 = vmatprep.subr.bf16.mxu0 %v1051
    %1083 = vmatpush1.bf16.msra.mxu0 %v1050
    %1084 = vmatprep.subr.bf16.mxu0 %v1053
    %1085 = vmatpush1.bf16.msra.mxu0 %v1052
    %1086 = vmatprep.subr.bf16.mxu0 %v1055
    %1087 = vmatpush1.bf16.msra.mxu0 %v1054
    %1088 = vmatprep.subr.bf16.mxu0 0
    %1089 = vmatpush1.bf16.msra.mxu0 0
    %1090 = vmatprep.subr.bf16.mxu0 0
    %1091 = vmatpush1.bf16.msra.mxu0 0
    %1092 = vmatprep.subr.bf16.mxu0 0
    %1093 = vmatpush1.bf16.msra.mxu0 0
    %1094 = vmatprep.subr.bf16.mxu0 0
    %1095 = vmatpush1.bf16.msra.mxu0 0
    %1096 = vmatprep.subr.bf16.mxu0 0
    %1097 = vmatpush1.bf16.msra.mxu0 0
    %1098 = vmatprep.subr.bf16.mxu0 0
    %1099 = vmatpush1.bf16.msra.mxu0 0
    %1100 = vmatprep.subr.bf16.mxu0 0
    %1101 = vmatpush1.bf16.msra.mxu0 0
    %1102 = vmatprep.subr.bf16.mxu0 0
    %1103 = vmatpush1.bf16.msra.mxu0 0
    %1104 = vmatprep.mubr.bf16.mxu0 0
    %1105 = vmatmul.mubr.bf16.gmra.mrb[0].mxu0 %v462
    %v1106 = vpop.f32.mrb[0].mxu0
    %v1107 = vadd.f32 %v986, %v1106
    %v1108 = vpop.f32.mrb[0].mxu0
    %v1109 = vadd.f32 %v988, %v1108
    %v1110 = vpop.f32.mrb[0].mxu0
    %v1111 = vpop.f32.mrb[0].mxu0
    %1112 = vdwg.mxu0
    %s1113 = scalar_lea.vmem %s0, 32
    %v1114 = vld [vmem:[%s1113] sm:$0xff]
    %s1115 = scalar_lea.vmem [#allocation2], 64
    %v1116 = vld [vmem:[%s1115] sm:$0xf]
    %v1117 = vld [vmem:[%s1115 + $0x4] sm:$0xf]
    %v1118 = vld [vmem:[%s1115 + $0x8] sm:$0xf]
    %v1119 = vld [vmem:[%s1115 + $0xc] sm:$0xf]
    %s1120 = scalar_lea.vmem %s2, 4
    %v1121 = vld [vmem:[%s1120] sm:$0x1]
    %v1122 = vpack.c.bf16 %v1114, %v1114
    %v1124 = vlaneseq
    %v1125 = vshrl.u32 %v1124, 7
    %v1126 = vsub.s32 0, %v1125
    %v1127 = vrot.slane %v1121, %v1126
    %v1133 = vunpack.c.l.b16 %v1116
    %v1134 = vunpack.c.l.b16 %v1117
    %v1135 = vunpack.c.l.b16 %v1118
    %v1136 = vunpack.c.l.b16 %v1119
    %v1137 = vpack.c.b16 %v1134, %v1133
    %v1138 = vpack.c.b16 %v1136, %v1135
    %v1142 = vsel %vm116, %v1122, 0
    %1144 = vmatprep.subr.bf16.mxu0 0
    %1145 = vmatpush1.bf16.msra.mxu0 %v1137
    %1146 = vmatprep.subr.bf16.mxu0 0
    %1147 = vmatpush1.bf16.msra.mxu0 %v1138
    %1148 = vmatprep.subr.bf16.mxu0 0
    %1149 = vmatpush1.bf16.msra.mxu0 0
    %1150 = vmatprep.subr.bf16.mxu0 0
    %1151 = vmatpush1.bf16.msra.mxu0 0
    %1152 = vmatprep.subr.bf16.mxu0 0
    %1153 = vmatpush1.bf16.msra.mxu0 0
    %1154 = vmatprep.subr.bf16.mxu0 0
    %1155 = vmatpush1.bf16.msra.mxu0 0
    %1156 = vmatprep.subr.bf16.mxu0 0
    %1157 = vmatpush1.bf16.msra.mxu0 0
    %1158 = vmatprep.subr.bf16.mxu0 0
    %1159 = vmatpush1.bf16.msra.mxu0 0
    %1160 = vmatprep.subr.bf16.mxu0 0
    %1161 = vmatpush1.bf16.msra.mxu0 0
    %1162 = vmatprep.subr.bf16.mxu0 0
    %1163 = vmatpush1.bf16.msra.mxu0 0
    %1164 = vmatprep.subr.bf16.mxu0 0
    %1165 = vmatpush1.bf16.msra.mxu0 0
    %1166 = vmatprep.subr.bf16.mxu0 0
    %1167 = vmatpush1.bf16.msra.mxu0 0
    %1168 = vmatprep.subr.bf16.mxu0 0
    %1169 = vmatpush1.bf16.msra.mxu0 0
    %1170 = vmatprep.subr.bf16.mxu0 0
    %1171 = vmatpush1.bf16.msra.mxu0 0
    %1172 = vmatprep.subr.bf16.mxu0 0
    %1173 = vmatpush1.bf16.msra.mxu0 0
    %1174 = vmatprep.subr.bf16.mxu0 0
    %1175 = vmatpush1.bf16.msra.mxu0 0
    %1176 = vmatprep.mubr.bf16.mxu0 0
    %1177 = vmatmul.mubr.bf16.gmra.mrb[0].mxu0 %v1142
    %v1178 = vpop.f32.mrb[0].mxu0
    %v1179 = vadd.f32 %v1127, %v1178
    %v1180 = vpop.f32.mrb[0].mxu0
    %v1181 = vpop.f32.mrb[0].mxu0
    %v1182 = vpop.f32.mrb[0].mxu0
    %1183 = vdwg.mxu0
    %v1184 = vmax.f32 %v1179, 0.0
    %s1185 = scalar_lea.vmem [#allocation4], 256
    %v1186 = vld [vmem:[%s1185] sm:$0xf]
    %v1187 = vld [vmem:[%s1185 + $0x4] sm:$0xf]
    %v1188 = vld [vmem:[%s1185 + $0x8] sm:$0xf]
    %v1189 = vld [vmem:[%s1185 + $0xc] sm:$0xf]
    %v1190 = vld [vmem:[%s1185 + $0x10] sm:$0xf]
    %v1191 = vld [vmem:[%s1185 + $0x14] sm:$0xf]
    %v1192 = vld [vmem:[%s1185 + $0x18] sm:$0xf]
    %v1193 = vld [vmem:[%s1185 + $0x1c] sm:$0xf]
    %v1194 = vld [vmem:[%s1185 + $0x20] sm:$0xf]
    %v1195 = vld [vmem:[%s1185 + $0x24] sm:$0xf]
    %v1196 = vld [vmem:[%s1185 + $0x28] sm:$0xf]
    %v1197 = vld [vmem:[%s1185 + $0x2c] sm:$0xf]
    %v1198 = vld [vmem:[%s1185 + $0x30] sm:$0xf]
    %v1199 = vld [vmem:[%s1185 + $0x34] sm:$0xf]
    %v1200 = vld [vmem:[%s1185 + $0x38] sm:$0xf]
    %v1201 = vld [vmem:[%s1185 + $0x3c] sm:$0xf]
    %s1202 = scalar_lea.vmem %s4, 4
    %v1203 = vld [vmem:[%s1202] sm:$0x1]
    %v1204 = vpack.c.bf16 %v1184, %v1184
    %v1206 = vlaneseq
    %v1207 = vshrl.u32 %v1206, 7
    %v1208 = vsub.s32 0, %v1207
    %v1209 = vrot.slane %v1203, %v1208
    %v1227 = vunpack.c.l.b16 %v1186
    %v1228 = vunpack.c.l.b16 %v1187
    %v1229 = vunpack.c.l.b16 %v1188
    %v1230 = vunpack.c.l.b16 %v1189
    %v1231 = vunpack.c.l.b16 %v1190
    %v1232 = vunpack.c.l.b16 %v1191
    %v1233 = vunpack.c.l.b16 %v1192
    %v1234 = vunpack.c.l.b16 %v1193
    %v1235 = vunpack.c.l.b16 %v1194
    %v1236 = vunpack.c.l.b16 %v1195
    %v1237 = vunpack.c.l.b16 %v1196
    %v1238 = vunpack.c.l.b16 %v1197
    %v1239 = vunpack.c.l.b16 %v1198
    %v1240 = vunpack.c.l.b16 %v1199
    %v1241 = vunpack.c.l.b16 %v1200
    %v1242 = vunpack.c.l.b16 %v1201
    %v1243 = vpack.c.b16 %v1228, %v1227
    %v1244 = vpack.c.b16 %v1230, %v1229
    %v1245 = vpack.c.b16 %v1232, %v1231
    %v1246 = vpack.c.b16 %v1234, %v1233
    %v1247 = vpack.c.b16 %v1236, %v1235
    %v1248 = vpack.c.b16 %v1238, %v1237
    %v1249 = vpack.c.b16 %v1240, %v1239
    %v1250 = vpack.c.b16 %v1242, %v1241
    %1259 = vmatprep.subr.bf16.mxu0 0
    %1260 = vmatpush1.bf16.msra.mxu0 %v1243
    %1261 = vmatprep.subr.bf16.mxu0 0
    %1262 = vmatpush1.bf16.msra.mxu0 %v1244
    %1263 = vmatprep.subr.bf16.mxu0 0
    %1264 = vmatpush1.bf16.msra.mxu0 %v1245
    %1265 = vmatprep.subr.bf16.mxu0 0
    %1266 = vmatpush1.bf16.msra.mxu0 %v1246
    %1267 = vmatprep.subr.bf16.mxu0 0
    %1268 = vmatpush1.bf16.msra.mxu0 %v1247
    %1269 = vmatprep.subr.bf16.mxu0 0
    %1270 = vmatpush1.bf16.msra.mxu0 %v1248
    %1271 = vmatprep.subr.bf16.mxu0 0
    %1272 = vmatpush1.bf16.msra.mxu0 %v1249
    %1273 = vmatprep.subr.bf16.mxu0 0
    %1274 = vmatpush1.bf16.msra.mxu0 %v1250
    %1275 = vmatprep.subr.bf16.mxu0 0
    %1276 = vmatpush1.bf16.msra.mxu0 0
    %1277 = vmatprep.subr.bf16.mxu0 0
    %1278 = vmatpush1.bf16.msra.mxu0 0
    %1279 = vmatprep.subr.bf16.mxu0 0
    %1280 = vmatpush1.bf16.msra.mxu0 0
    %1281 = vmatprep.subr.bf16.mxu0 0
    %1282 = vmatpush1.bf16.msra.mxu0 0
    %1283 = vmatprep.subr.bf16.mxu0 0
    %1284 = vmatpush1.bf16.msra.mxu0 0
    %1285 = vmatprep.subr.bf16.mxu0 0
    %1286 = vmatpush1.bf16.msra.mxu0 0
    %1287 = vmatprep.subr.bf16.mxu0 0
    %1288 = vmatpush1.bf16.msra.mxu0 0
    %1289 = vmatprep.subr.bf16.mxu0 0
    %1290 = vmatpush1.bf16.msra.mxu0 0
    %1291 = vmatprep.mubr.bf16.mxu0 0
    %1292 = vmatmul.mubr.bf16.gmra.mrb[0].mxu0 %v1204
    %v1293 = vpop.f32.mrb[0].mxu0
    %v1294 = vadd.f32 %v1209, %v1293
    %v1295 = vpop.f32.mrb[0].mxu0
    %v1296 = vpop.f32.mrb[0].mxu0
    %v1297 = vpop.f32.mrb[0].mxu0
    %1298 = vdwg.mxu0
    %v1299 = vmax.f32 %v1294, 0.0
    %v1300 = vld [vmem:[%s5] sm:$0xf]
    %v1301 = vld [vmem:[%s5 + $0x4] sm:$0xf]
    %v1302 = vld [vmem:[%s5 + $0x8] sm:$0xf]
    %v1303 = vld [vmem:[%s5 + $0xc] sm:$0xf]
    %v1304 = vld [vmem:[%s5 + $0x10] sm:$0xf]
    %v1305 = vld [vmem:[%s5 + $0x14] sm:$0xf]
    %v1306 = vld [vmem:[%s5 + $0x18] sm:$0xf]
    %v1307 = vld [vmem:[%s5 + $0x1c] sm:$0xf]
    %v1308 = vld [vmem:[%s5 + $0x20] sm:$0xf]
    %v1309 = vld [vmem:[%s5 + $0x24] sm:$0xf]
    %v1310 = vld [vmem:[%s5 + $0x28] sm:$0xf]
    %v1311 = vld [vmem:[%s5 + $0x2c] sm:$0xf]
    %v1312 = vld [vmem:[%s5 + $0x30] sm:$0xf]
    %v1313 = vld [vmem:[%s5 + $0x34] sm:$0xf]
    %v1314 = vld [vmem:[%s5 + $0x38] sm:$0xf]
    %v1315 = vld [vmem:[%s5 + $0x3c] sm:$0xf]
    %v1316 = vld [vmem:[%s6] sm:$0x1]
    %v1317 = vpack.c.bf16 %v1299, %v1299
    %v1319 = vlaneseq
    %v1320 = vshrl.u32 %v1319, 7
    %v1321 = vsub.s32 0, %v1320
    %v1322 = vrot.slane %v1316, %v1321
    %v1340 = vunpack.c.l.b16 %v1300
    %v1341 = vunpack.c.l.b16 %v1301
    %v1342 = vunpack.c.l.b16 %v1302
    %v1343 = vunpack.c.l.b16 %v1303
    %v1344 = vunpack.c.l.b16 %v1304
    %v1345 = vunpack.c.l.b16 %v1305
    %v1346 = vunpack.c.l.b16 %v1306
    %v1347 = vunpack.c.l.b16 %v1307
    %v1348 = vunpack.c.l.b16 %v1308
    %v1349 = vunpack.c.l.b16 %v1309
    %v1350 = vunpack.c.l.b16 %v1310
    %v1351 = vunpack.c.l.b16 %v1311
    %v1352 = vunpack.c.l.b16 %v1312
    %v1353 = vunpack.c.l.b16 %v1313
    %v1354 = vunpack.c.l.b16 %v1314
    %v1355 = vunpack.c.l.b16 %v1315
    %v1356 = vpack.c.b16 %v1341, %v1340
    %v1357 = vpack.c.b16 %v1343, %v1342
    %v1358 = vpack.c.b16 %v1345, %v1344
    %v1359 = vpack.c.b16 %v1347, %v1346
    %v1360 = vpack.c.b16 %v1349, %v1348
    %v1361 = vpack.c.b16 %v1351, %v1350
    %v1362 = vpack.c.b16 %v1353, %v1352
    %v1363 = vpack.c.b16 %v1355, %v1354
    %1372 = vmatprep.subr.bf16.mxu0 0
    %1373 = vmatpush1.bf16.msra.mxu0 %v1356
    %1374 = vmatprep.subr.bf16.mxu0 0
    %1375 = vmatpush1.bf16.msra.mxu0 %v1357
    %1376 = vmatprep.subr.bf16.mxu0 0
    %1377 = vmatpush1.bf16.msra.mxu0 %v1358
    %1378 = vmatprep.subr.bf16.mxu0 0
    %1379 = vmatpush1.bf16.msra.mxu0 %v1359
    %1380 = vmatprep.subr.bf16.mxu0 0
    %1381 = vmatpush1.bf16.msra.mxu0 %v1360
    %1382 = vmatprep.subr.bf16.mxu0 0
    %1383 = vmatpush1.bf16.msra.mxu0 %v1361
    %1384 = vmatprep.subr.bf16.mxu0 0
    %1385 = vmatpush1.bf16.msra.mxu0 %v1362
    %1386 = vmatprep.subr.bf16.mxu0 0
    %1387 = vmatpush1.bf16.msra.mxu0 %v1363
    %1388 = vmatprep.subr.bf16.mxu0 0
    %1389 = vmatpush1.bf16.msra.mxu0 0
    %1390 = vmatprep.subr.bf16.mxu0 0
    %1391 = vmatpush1.bf16.msra.mxu0 0
    %1392 = vmatprep.subr.bf16.mxu0 0
    %1393 = vmatpush1.bf16.msra.mxu0 0
    %1394 = vmatprep.subr.bf16.mxu0 0
    %1395 = vmatpush1.bf16.msra.mxu0 0
    %1396 = vmatprep.subr.bf16.mxu0 0
    %1397 = vmatpush1.bf16.msra.mxu0 0
    %1398 = vmatprep.subr.bf16.mxu0 0
    %1399 = vmatpush1.bf16.msra.mxu0 0
    %1400 = vmatprep.subr.bf16.mxu0 0
    %1401 = vmatpush1.bf16.msra.mxu0 0
    %1402 = vmatprep.subr.bf16.mxu0 0
    %1403 = vmatpush1.bf16.msra.mxu0 0
    %1404 = vmatprep.mubr.bf16.mxu0 0
    %1405 = vmatmul.mubr.bf16.gmra.mrb[0].mxu0 %v1317
    %v1406 = vpop.f32.mrb[0].mxu0
    %v1407 = vadd.f32 %v1322, %v1406
    %v1408 = vpop.f32.mrb[0].mxu0
    %v1409 = vpop.f32.mrb[0].mxu0
    %v1410 = vpop.f32.mrb[0].mxu0
    %1411 = vdwg.mxu0
    %v1412 = vmax.f32 %v1407, 0.0
    %s1413 = scalar_lea.vmem %s0, 40
    %v1414 = vld [vmem:[%s1413] sm:$0xff]
    %s1415 = scalar_lea.vmem [#allocation2], 80
    %v1416 = vld [vmem:[%s1415] sm:$0xf]
    %v1417 = vld [vmem:[%s1415 + $0x4] sm:$0xf]
    %v1418 = vld [vmem:[%s1415 + $0x8] sm:$0xf]
    %v1419 = vld [vmem:[%s1415 + $0xc] sm:$0xf]
    %s1420 = scalar_lea.vmem %s2, 5
    %v1421 = vld [vmem:[%s1420] sm:$0x1]
    %v1422 = vpack.c.bf16 %v1414, %v1414
    %v1424 = vlaneseq
    %v1425 = vshrl.u32 %v1424, 7
    %v1426 = vsub.s32 0, %v1425
    %v1427 = vrot.slane %v1421, %v1426
    %v1433 = vunpack.c.l.b16 %v1416
    %v1434 = vunpack.c.l.b16 %v1417
    %v1435 = vunpack.c.l.b16 %v1418
    %v1436 = vunpack.c.l.b16 %v1419
    %v1437 = vpack.c.b16 %v1434, %v1433
    %v1438 = vpack.c.b16 %v1436, %v1435
    %v1442 = vsel %vm116, %v1422, 0
    %1444 = vmatprep.subr.bf16.mxu0 0
    %1445 = vmatpush1.bf16.msra.mxu0 %v1437
    %1446 = vmatprep.subr.bf16.mxu0 0
    %1447 = vmatpush1.bf16.msra.mxu0 %v1438
    %1448 = vmatprep.subr.bf16.mxu0 0
    %1449 = vmatpush1.bf16.msra.mxu0 0
    %1450 = vmatprep.subr.bf16.mxu0 0
    %1451 = vmatpush1.bf16.msra.mxu0 0
    %1452 = vmatprep.subr.bf16.mxu0 0
    %1453 = vmatpush1.bf16.msra.mxu0 0
    %1454 = vmatprep.subr.bf16.mxu0 0
    %1455 = vmatpush1.bf16.msra.mxu0 0
    %1456 = vmatprep.subr.bf16.mxu0 0
    %1457 = vmatpush1.bf16.msra.mxu0 0
    %1458 = vmatprep.subr.bf16.mxu0 0
    %1459 = vmatpush1.bf16.msra.mxu0 0
    %1460 = vmatprep.subr.bf16.mxu0 0
    %1461 = vmatpush1.bf16.msra.mxu0 0
    %1462 = vmatprep.subr.bf16.mxu0 0
    %1463 = vmatpush1.bf16.msra.mxu0 0
    %1464 = vmatprep.subr.bf16.mxu0 0
    %1465 = vmatpush1.bf16.msra.mxu0 0
    %1466 = vmatprep.subr.bf16.mxu0 0
    %1467 = vmatpush1.bf16.msra.mxu0 0
    %1468 = vmatprep.subr.bf16.mxu0 0
    %1469 = vmatpush1.bf16.msra.mxu0 0
    %1470 = vmatprep.subr.bf16.mxu0 0
    %1471 = vmatpush1.bf16.msra.mxu0 0
    %1472 = vmatprep.subr.bf16.mxu0 0
    %1473 = vmatpush1.bf16.msra.mxu0 0
    %1474 = vmatprep.subr.bf16.mxu0 0
    %1475 = vmatpush1.bf16.msra.mxu0 0
    %1476 = vmatprep.mubr.bf16.mxu0 0
    %1477 = vmatmul.mubr.bf16.gmra.mrb[0].mxu0 %v1442
    %v1478 = vpop.f32.mrb[0].mxu0
    %v1479 = vadd.f32 %v1427, %v1478
    %v1480 = vpop.f32.mrb[0].mxu0
    %v1481 = vpop.f32.mrb[0].mxu0
    %v1482 = vpop.f32.mrb[0].mxu0
    %1483 = vdwg.mxu0
    %v1484 = vmax.f32 %v1479, 0.0
    %s1485 = scalar_lea.vmem [#allocation4], 320
    %v1486 = vld [vmem:[%s1485] sm:$0xf]
    %v1487 = vld [vmem:[%s1485 + $0x4] sm:$0xf]
    %v1488 = vld [vmem:[%s1485 + $0x8] sm:$0xf]
    %v1489 = vld [vmem:[%s1485 + $0xc] sm:$0xf]
    %v1490 = vld [vmem:[%s1485 + $0x10] sm:$0xf]
    %v1491 = vld [vmem:[%s1485 + $0x14] sm:$0xf]
    %v1492 = vld [vmem:[%s1485 + $0x18] sm:$0xf]
    %v1493 = vld [vmem:[%s1485 + $0x1c] sm:$0xf]
    %v1494 = vld [vmem:[%s1485 + $0x20] sm:$0xf]
    %v1495 = vld [vmem:[%s1485 + $0x24] sm:$0xf]
    %v1496 = vld [vmem:[%s1485 + $0x28] sm:$0xf]
    %v1497 = vld [vmem:[%s1485 + $0x2c] sm:$0xf]
    %v1498 = vld [vmem:[%s1485 + $0x30] sm:$0xf]
    %v1499 = vld [vmem:[%s1485 + $0x34] sm:$0xf]
    %v1500 = vld [vmem:[%s1485 + $0x38] sm:$0xf]
    %v1501 = vld [vmem:[%s1485 + $0x3c] sm:$0xf]
    %s1502 = scalar_lea.vmem %s4, 5
    %v1503 = vld [vmem:[%s1502] sm:$0x1]
    %v1504 = vpack.c.bf16 %v1484, %v1484
    %v1506 = vlaneseq
    %v1507 = vshrl.u32 %v1506, 7
    %v1508 = vsub.s32 0, %v1507
    %v1509 = vrot.slane %v1503, %v1508
    %v1527 = vunpack.c.l.b16 %v1486
    %v1528 = vunpack.c.l.b16 %v1487
    %v1529 = vunpack.c.l.b16 %v1488
    %v1530 = vunpack.c.l.b16 %v1489
    %v1531 = vunpack.c.l.b16 %v1490
    %v1532 = vunpack.c.l.b16 %v1491
    %v1533 = vunpack.c.l.b16 %v1492
    %v1534 = vunpack.c.l.b16 %v1493
    %v1535 = vunpack.c.l.b16 %v1494
    %v1536 = vunpack.c.l.b16 %v1495
    %v1537 = vunpack.c.l.b16 %v1496
    %v1538 = vunpack.c.l.b16 %v1497
    %v1539 = vunpack.c.l.b16 %v1498
    %v1540 = vunpack.c.l.b16 %v1499
    %v1541 = vunpack.c.l.b16 %v1500
    %v1542 = vunpack.c.l.b16 %v1501
    %v1543 = vpack.c.b16 %v1528, %v1527
    %v1544 = vpack.c.b16 %v1530, %v1529
    %v1545 = vpack.c.b16 %v1532, %v1531
    %v1546 = vpack.c.b16 %v1534, %v1533
    %v1547 = vpack.c.b16 %v1536, %v1535
    %v1548 = vpack.c.b16 %v1538, %v1537
    %v1549 = vpack.c.b16 %v1540, %v1539
    %v1550 = vpack.c.b16 %v1542, %v1541
    %1559 = vmatprep.subr.bf16.mxu0 0
    %1560 = vmatpush1.bf16.msra.mxu0 %v1543
    %1561 = vmatprep.subr.bf16.mxu0 0
    %1562 = vmatpush1.bf16.msra.mxu0 %v1544
    %1563 = vmatprep.subr.bf16.mxu0 0
    %1564 = vmatpush1.bf16.msra.mxu0 %v1545
    %1565 = vmatprep.subr.bf16.mxu0 0
    %1566 = vmatpush1.bf16.msra.mxu0 %v1546
    %1567 = vmatprep.subr.bf16.mxu0 0
    %1568 = vmatpush1.bf16.msra.mxu0 %v1547
    %1569 = vmatprep.subr.bf16.mxu0 0
    %1570 = vmatpush1.bf16.msra.mxu0 %v1548
    %1571 = vmatprep.subr.bf16.mxu0 0
    %1572 = vmatpush1.bf16.msra.mxu0 %v1549
    %1573 = vmatprep.subr.bf16.mxu0 0
    %1574 = vmatpush1.bf16.msra.mxu0 %v1550
    %1575 = vmatprep.subr.bf16.mxu0 0
    %1576 = vmatpush1.bf16.msra.mxu0 0
    %1577 = vmatprep.subr.bf16.mxu0 0
    %1578 = vmatpush1.bf16.msra.mxu0 0
    %1579 = vmatprep.subr.bf16.mxu0 0
    %1580 = vmatpush1.bf16.msra.mxu0 0
    %1581 = vmatprep.subr.bf16.mxu0 0
    %1582 = vmatpush1.bf16.msra.mxu0 0
    %1583 = vmatprep.subr.bf16.mxu0 0
    %1584 = vmatpush1.bf16.msra.mxu0 0
    %1585 = vmatprep.subr.bf16.mxu0 0
    %1586 = vmatpush1.bf16.msra.mxu0 0
    %1587 = vmatprep.subr.bf16.mxu0 0
    %1588 = vmatpush1.bf16.msra.mxu0 0
    %1589 = vmatprep.subr.bf16.mxu0 0
    %1590 = vmatpush1.bf16.msra.mxu0 0
    %1591 = vmatprep.mubr.bf16.mxu0 0
    %1592 = vmatmul.mubr.bf16.gmra.mrb[0].mxu0 %v1504
    %v1593 = vpop.f32.mrb[0].mxu0
    %v1594 = vadd.f32 %v1509, %v1593
    %v1595 = vpop.f32.mrb[0].mxu0
    %v1596 = vpop.f32.mrb[0].mxu0
    %v1597 = vpop.f32.mrb[0].mxu0
    %1598 = vdwg.mxu0
    %v1599 = vmax.f32 %v1594, 0.0
    %s1600 = scalar_lea.vmem %s5, 64
    %v1601 = vld [vmem:[%s1600] sm:$0xf]
    %v1602 = vld [vmem:[%s1600 + $0x4] sm:$0xf]
    %v1603 = vld [vmem:[%s1600 + $0x8] sm:$0xf]
    %v1604 = vld [vmem:[%s1600 + $0xc] sm:$0xf]
    %v1605 = vld [vmem:[%s1600 + $0x10] sm:$0xf]
    %v1606 = vld [vmem:[%s1600 + $0x14] sm:$0xf]
    %v1607 = vld [vmem:[%s1600 + $0x18] sm:$0xf]
    %v1608 = vld [vmem:[%s1600 + $0x1c] sm:$0xf]
    %v1609 = vld [vmem:[%s1600 + $0x20] sm:$0xf]
    %v1610 = vld [vmem:[%s1600 + $0x24] sm:$0xf]
    %v1611 = vld [vmem:[%s1600 + $0x28] sm:$0xf]
    %v1612 = vld [vmem:[%s1600 + $0x2c] sm:$0xf]
    %v1613 = vld [vmem:[%s1600 + $0x30] sm:$0xf]
    %v1614 = vld [vmem:[%s1600 + $0x34] sm:$0xf]
    %v1615 = vld [vmem:[%s1600 + $0x38] sm:$0xf]
    %v1616 = vld [vmem:[%s1600 + $0x3c] sm:$0xf]
    %s1617 = scalar_lea.vmem %s6, 1
    %v1618 = vld [vmem:[%s1617] sm:$0x1]
    %v1619 = vpack.c.bf16 %v1599, %v1599
    %v1621 = vlaneseq
    %v1622 = vshrl.u32 %v1621, 7
    %v1623 = vsub.s32 0, %v1622
    %v1624 = vrot.slane %v1618, %v1623
    %v1642 = vunpack.c.l.b16 %v1601
    %v1643 = vunpack.c.l.b16 %v1602
    %v1644 = vunpack.c.l.b16 %v1603
    %v1645 = vunpack.c.l.b16 %v1604
    %v1646 = vunpack.c.l.b16 %v1605
    %v1647 = vunpack.c.l.b16 %v1606
    %v1648 = vunpack.c.l.b16 %v1607
    %v1649 = vunpack.c.l.b16 %v1608
    %v1650 = vunpack.c.l.b16 %v1609
    %v1651 = vunpack.c.l.b16 %v1610
    %v1652 = vunpack.c.l.b16 %v1611
    %v1653 = vunpack.c.l.b16 %v1612
    %v1654 = vunpack.c.l.b16 %v1613
    %v1655 = vunpack.c.l.b16 %v1614
    %v1656 = vunpack.c.l.b16 %v1615
    %v1657 = vunpack.c.l.b16 %v1616
    %v1658 = vpack.c.b16 %v1643, %v1642
    %v1659 = vpack.c.b16 %v1645, %v1644
    %v1660 = vpack.c.b16 %v1647, %v1646
    %v1661 = vpack.c.b16 %v1649, %v1648
    %v1662 = vpack.c.b16 %v1651, %v1650
    %v1663 = vpack.c.b16 %v1653, %v1652
    %v1664 = vpack.c.b16 %v1655, %v1654
    %v1665 = vpack.c.b16 %v1657, %v1656
    %1674 = vmatprep.subr.bf16.mxu0 0
    %1675 = vmatpush1.bf16.msra.mxu0 %v1658
    %1676 = vmatprep.subr.bf16.mxu0 0
    %1677 = vmatpush1.bf16.msra.mxu0 %v1659
    %1678 = vmatprep.subr.bf16.mxu0 0
    %1679 = vmatpush1.bf16.msra.mxu0 %v1660
    %1680 = vmatprep.subr.bf16.mxu0 0
    %1681 = vmatpush1.bf16.msra.mxu0 %v1661
    %1682 = vmatprep.subr.bf16.mxu0 0
    %1683 = vmatpush1.bf16.msra.mxu0 %v1662
    %1684 = vmatprep.subr.bf16.mxu0 0
    %1685 = vmatpush1.bf16.msra.mxu0 %v1663
    %1686 = vmatprep.subr.bf16.mxu0 0
    %1687 = vmatpush1.bf16.msra.mxu0 %v1664
    %1688 = vmatprep.subr.bf16.mxu0 0
    %1689 = vmatpush1.bf16.msra.mxu0 %v1665
    %1690 = vmatprep.subr.bf16.mxu0 0
    %1691 = vmatpush1.bf16.msra.mxu0 0
    %1692 = vmatprep.subr.bf16.mxu0 0
    %1693 = vmatpush1.bf16.msra.mxu0 0
    %1694 = vmatprep.subr.bf16.mxu0 0
    %1695 = vmatpush1.bf16.msra.mxu0 0
    %1696 = vmatprep.subr.bf16.mxu0 0
    %1697 = vmatpush1.bf16.msra.mxu0 0
    %1698 = vmatprep.subr.bf16.mxu0 0
    %1699 = vmatpush1.bf16.msra.mxu0 0
    %1700 = vmatprep.subr.bf16.mxu0 0
    %1701 = vmatpush1.bf16.msra.mxu0 0
    %1702 = vmatprep.subr.bf16.mxu0 0
    %1703 = vmatpush1.bf16.msra.mxu0 0
    %1704 = vmatprep.subr.bf16.mxu0 0
    %1705 = vmatpush1.bf16.msra.mxu0 0
    %1706 = vmatprep.mubr.bf16.mxu0 0
    %1707 = vmatmul.mubr.bf16.gmra.mrb[0].mxu0 %v1619
    %v1708 = vpop.f32.mrb[0].mxu0
    %v1709 = vadd.f32 %v1624, %v1708
    %v1710 = vpop.f32.mrb[0].mxu0
    %v1711 = vpop.f32.mrb[0].mxu0
    %v1712 = vpop.f32.mrb[0].mxu0
    %1713 = vdwg.mxu0
    %v1714 = vmax.f32 %v1709, 0.0
    %v1715 = vadd.f32 %v1412, %v1714
    %v1716 = vpack.c.bf16 %v1715, %v1715
    %v1717 = vld [vmem:[#allocation6 + $0x100] sm:$0xff]
    %v1718 = vld [vmem:[#allocation6 + $0x108] sm:$0xff]
    %v1719 = vld [vmem:[#allocation6 + $0x110] sm:$0xff]
    %v1720 = vld [vmem:[#allocation6 + $0x118] sm:$0xff]
    %v1721 = vld [vmem:[#allocation6 + $0x120] sm:$0xff]
    %v1722 = vld [vmem:[#allocation6 + $0x128] sm:$0xff]
    %v1723 = vld [vmem:[#allocation6 + $0x130] sm:$0xff]
    %v1724 = vld [vmem:[#allocation6 + $0x138] sm:$0xff]
    %v1725 = vld [vmem:[#allocation6 + $0x140] sm:$0xff]
    %v1726 = vld [vmem:[#allocation6 + $0x148] sm:$0xff]
    %v1727 = vld [vmem:[#allocation6 + $0x150] sm:$0xff]
    %v1728 = vld [vmem:[#allocation6 + $0x158] sm:$0xff]
    %v1729 = vld [vmem:[#allocation6 + $0x160] sm:$0xff]
    %v1730 = vld [vmem:[#allocation6 + $0x168] sm:$0xff]
    %v1731 = vld [vmem:[#allocation6 + $0x170] sm:$0xff]
    %v1732 = vld [vmem:[#allocation6 + $0x178] sm:$0xff]
    %v1749 = vunpack.c.l.b16 %v1717
    %v1750 = vunpack.c.h.b16 %v1717
    %v1751 = vunpack.c.l.b16 %v1718
    %v1752 = vunpack.c.h.b16 %v1718
    %v1753 = vunpack.c.l.b16 %v1719
    %v1754 = vunpack.c.h.b16 %v1719
    %v1755 = vunpack.c.l.b16 %v1720
    %v1756 = vunpack.c.h.b16 %v1720
    %v1757 = vunpack.c.l.b16 %v1721
    %v1758 = vunpack.c.h.b16 %v1721
    %v1759 = vunpack.c.l.b16 %v1722
    %v1760 = vunpack.c.h.b16 %v1722
    %v1761 = vunpack.c.l.b16 %v1723
    %v1762 = vunpack.c.h.b16 %v1723
    %v1763 = vunpack.c.l.b16 %v1724
    %v1764 = vunpack.c.h.b16 %v1724
    %v1765 = vunpack.c.l.b16 %v1725
    %v1766 = vunpack.c.h.b16 %v1725
    %v1767 = vunpack.c.l.b16 %v1726
    %v1768 = vunpack.c.h.b16 %v1726
    %v1769 = vunpack.c.l.b16 %v1727
    %v1770 = vunpack.c.h.b16 %v1727
    %v1771 = vunpack.c.l.b16 %v1728
    %v1772 = vunpack.c.h.b16 %v1728
    %v1773 = vunpack.c.l.b16 %v1729
    %v1774 = vunpack.c.h.b16 %v1729
    %v1775 = vunpack.c.l.b16 %v1730
    %v1776 = vunpack.c.h.b16 %v1730
    %v1777 = vunpack.c.l.b16 %v1731
    %v1778 = vunpack.c.h.b16 %v1731
    %v1779 = vunpack.c.l.b16 %v1732
    %v1780 = vunpack.c.h.b16 %v1732
    %v1781 = vpack.c.b16 %v1751, %v1749
    %v1782 = vpack.c.b16 %v1752, %v1750
    %v1783 = vpack.c.b16 %v1755, %v1753
    %v1784 = vpack.c.b16 %v1756, %v1754
    %v1785 = vpack.c.b16 %v1759, %v1757
    %v1786 = vpack.c.b16 %v1760, %v1758
    %v1787 = vpack.c.b16 %v1763, %v1761
    %v1788 = vpack.c.b16 %v1764, %v1762
    %v1789 = vpack.c.b16 %v1767, %v1765
    %v1790 = vpack.c.b16 %v1768, %v1766
    %v1791 = vpack.c.b16 %v1771, %v1769
    %v1792 = vpack.c.b16 %v1772, %v1770
    %v1793 = vpack.c.b16 %v1775, %v1773
    %v1794 = vpack.c.b16 %v1776, %v1774
    %v1795 = vpack.c.b16 %v1779, %v1777
    %v1796 = vpack.c.b16 %v1780, %v1778
    %1813 = vmatprep.subr.bf16.mxu0 %v1782
    %1814 = vmatpush1.bf16.msra.mxu0 %v1781
    %1815 = vmatprep.subr.bf16.mxu0 %v1784
    %1816 = vmatpush1.bf16.msra.mxu0 %v1783
    %1817 = vmatprep.subr.bf16.mxu0 %v1786
    %1818 = vmatpush1.bf16.msra.mxu0 %v1785
    %1819 = vmatprep.subr.bf16.mxu0 %v1788
    %1820 = vmatpush1.bf16.msra.mxu0 %v1787
    %1821 = vmatprep.subr.bf16.mxu0 %v1790
    %1822 = vmatpush1.bf16.msra.mxu0 %v1789
    %1823 = vmatprep.subr.bf16.mxu0 %v1792
    %1824 = vmatpush1.bf16.msra.mxu0 %v1791
    %1825 = vmatprep.subr.bf16.mxu0 %v1794
    %1826 = vmatpush1.bf16.msra.mxu0 %v1793
    %1827 = vmatprep.subr.bf16.mxu0 %v1796
    %1828 = vmatpush1.bf16.msra.mxu0 %v1795
    %1829 = vmatprep.subr.bf16.mxu0 0
    %1830 = vmatpush1.bf16.msra.mxu0 0
    %1831 = vmatprep.subr.bf16.mxu0 0
    %1832 = vmatpush1.bf16.msra.mxu0 0
    %1833 = vmatprep.subr.bf16.mxu0 0
    %1834 = vmatpush1.bf16.msra.mxu0 0
    %1835 = vmatprep.subr.bf16.mxu0 0
    %1836 = vmatpush1.bf16.msra.mxu0 0
    %1837 = vmatprep.subr.bf16.mxu0 0
    %1838 = vmatpush1.bf16.msra.mxu0 0
    %1839 = vmatprep.subr.bf16.mxu0 0
    %1840 = vmatpush1.bf16.msra.mxu0 0
    %1841 = vmatprep.subr.bf16.mxu0 0
    %1842 = vmatpush1.bf16.msra.mxu0 0
    %1843 = vmatprep.subr.bf16.mxu0 0
    %1844 = vmatpush1.bf16.msra.mxu0 0
    %1845 = vmatprep.mubr.bf16.mxu0 0
    %1846 = vmatmul.mubr.bf16.gmra.mrb[0].mxu0 %v1716
    %v1847 = vpop.f32.mrb[0].mxu0
    %v1848 = vadd.f32 0.0, %v1847
    %v1849 = vpop.f32.mrb[0].mxu0
    %v1850 = vadd.f32 0.0, %v1849
    %v1851 = vpop.f32.mrb[0].mxu0
    %v1852 = vpop.f32.mrb[0].mxu0
    %1853 = vdwg.mxu0
    %v1854 = vadd.f32 %v1107, %v1848
    %v1855 = vadd.f32 %v1109, %v1850
    %v1856 = vld [vmem:[%s9] ss:$4 sm:$0x3]
    %v1858 = vlaneseq
    %v1859 = vshrl.u32 %v1858, 7
    %v1860 = vsub.s32 0, %v1859
    %v1861 = vrot.slane %v1856, %v1860
    %v1862 = vlaneseq
    %v1863 = vshrl.u32 %v1862, 7
    %v1864 = vsub.s32 1, %v1863
    %v1865 = vrot.slane %v1856, %v1864
    %v1868 = vadd.f32 %v1854, %v1861
    %v1869 = vadd.f32 %v1855, %v1865
    %v1870 = vmax.f32 %v1868, 0.0
    %v1871 = vmax.f32 %v1869, 0.0
    %v1872 = vld [vmem:[#allocation7] sm:$0xf]
    %v1873 = vld [vmem:[#allocation7 + $0x4] sm:$0xf]
    %v1874 = vld [vmem:[#allocation7 + $0x8] sm:$0xf]
    %v1875 = vld [vmem:[#allocation7 + $0xc] sm:$0xf]
    %v1876 = vld [vmem:[#allocation7 + $0x10] sm:$0xf]
    %v1877 = vld [vmem:[#allocation7 + $0x14] sm:$0xf]
    %v1878 = vld [vmem:[#allocation7 + $0x18] sm:$0xf]
    %v1879 = vld [vmem:[#allocation7 + $0x1c] sm:$0xf]
    %v1880 = vld [vmem:[#allocation7 + $0x20] sm:$0xf]
    %v1881 = vld [vmem:[#allocation7 + $0x24] sm:$0xf]
    %v1882 = vld [vmem:[#allocation7 + $0x28] sm:$0xf]
    %v1883 = vld [vmem:[#allocation7 + $0x2c] sm:$0xf]
    %v1884 = vld [vmem:[#allocation7 + $0x30] sm:$0xf]
    %v1885 = vld [vmem:[#allocation7 + $0x34] sm:$0xf]
    %v1886 = vld [vmem:[#allocation7 + $0x38] sm:$0xf]
    %v1887 = vld [vmem:[#allocation7 + $0x3c] sm:$0xf]
    %v1888 = vld [vmem:[#allocation7 + $0x40] sm:$0xf]
    %v1889 = vld [vmem:[#allocation7 + $0x44] sm:$0xf]
    %v1890 = vld [vmem:[#allocation7 + $0x48] sm:$0xf]
    %v1891 = vld [vmem:[#allocation7 + $0x4c] sm:$0xf]
    %v1892 = vld [vmem:[#allocation7 + $0x50] sm:$0xf]
    %v1893 = vld [vmem:[#allocation7 + $0x54] sm:$0xf]
    %v1894 = vld [vmem:[#allocation7 + $0x58] sm:$0xf]
    %v1895 = vld [vmem:[#allocation7 + $0x5c] sm:$0xf]
    %v1896 = vld [vmem:[#allocation7 + $0x60] sm:$0xf]
    %v1897 = vld [vmem:[#allocation7 + $0x64] sm:$0xf]
    %v1898 = vld [vmem:[#allocation7 + $0x68] sm:$0xf]
    %v1899 = vld [vmem:[#allocation7 + $0x6c] sm:$0xf]
    %v1900 = vld [vmem:[#allocation7 + $0x70] sm:$0xf]
    %v1901 = vld [vmem:[#allocation7 + $0x74] sm:$0xf]
    %v1902 = vld [vmem:[#allocation7 + $0x78] sm:$0xf]
    %v1903 = vld [vmem:[#allocation7 + $0x7c] sm:$0xf]
    %v1904 = vld [vmem:[%s9 + $0x1] sm:$0x1]
    %v1905 = vpack.c.bf16 %v1870, %v1870
    %v1906 = vpack.c.bf16 %v1871, %v1871
    %v1907 = vlaneseq
    %v1908 = vshrl.u32 %v1907, 7
    %v1909 = vsub.s32 0, %v1908
    %v1910 = vrot.slane %v1904, %v1909
    %v1943 = vunpack.c.l.b16 %v1872
    %v1944 = vunpack.c.l.b16 %v1873
    %v1945 = vunpack.c.l.b16 %v1874
    %v1946 = vunpack.c.l.b16 %v1875
    %v1947 = vunpack.c.l.b16 %v1876
    %v1948 = vunpack.c.l.b16 %v1877
    %v1949 = vunpack.c.l.b16 %v1878
    %v1950 = vunpack.c.l.b16 %v1879
    %v1951 = vunpack.c.l.b16 %v1880
    %v1952 = vunpack.c.l.b16 %v1881
    %v1953 = vunpack.c.l.b16 %v1882
    %v1954 = vunpack.c.l.b16 %v1883
    %v1955 = vunpack.c.l.b16 %v1884
    %v1956 = vunpack.c.l.b16 %v1885
    %v1957 = vunpack.c.l.b16 %v1886
    %v1958 = vunpack.c.l.b16 %v1887
    %v1959 = vunpack.c.l.b16 %v1888
    %v1960 = vunpack.c.l.b16 %v1889
    %v1961 = vunpack.c.l.b16 %v1890
    %v1962 = vunpack.c.l.b16 %v1891
    %v1963 = vunpack.c.l.b16 %v1892
    %v1964 = vunpack.c.l.b16 %v1893
    %v1965 = vunpack.c.l.b16 %v1894
    %v1966 = vunpack.c.l.b16 %v1895
    %v1967 = vunpack.c.l.b16 %v1896
    %v1968 = vunpack.c.l.b16 %v1897
    %v1969 = vunpack.c.l.b16 %v1898
    %v1970 = vunpack.c.l.b16 %v1899
    %v1971 = vunpack.c.l.b16 %v1900
    %v1972 = vunpack.c.l.b16 %v1901
    %v1973 = vunpack.c.l.b16 %v1902
    %v1974 = vunpack.c.l.b16 %v1903
    %v1975 = vpack.c.b16 %v1944, %v1943
    %v1976 = vpack.c.b16 %v1946, %v1945
    %v1977 = vpack.c.b16 %v1948, %v1947
    %v1978 = vpack.c.b16 %v1950, %v1949
    %v1979 = vpack.c.b16 %v1952, %v1951
    %v1980 = vpack.c.b16 %v1954, %v1953
    %v1981 = vpack.c.b16 %v1956, %v1955
    %v1982 = vpack.c.b16 %v1958, %v1957
    %v1983 = vpack.c.b16 %v1960, %v1959
    %v1984 = vpack.c.b16 %v1962, %v1961
    %v1985 = vpack.c.b16 %v1964, %v1963
    %v1986 = vpack.c.b16 %v1966, %v1965
    %v1987 = vpack.c.b16 %v1968, %v1967
    %v1988 = vpack.c.b16 %v1970, %v1969
    %v1989 = vpack.c.b16 %v1972, %v1971
    %v1990 = vpack.c.b16 %v1974, %v1973
    %2007 = vmatprep.subr.bf16.mxu0 0
    %2008 = vmatpush1.bf16.msra.mxu0 %v1975
    %2009 = vmatprep.subr.bf16.mxu0 0
    %2010 = vmatpush1.bf16.msra.mxu0 %v1976
    %2011 = vmatprep.subr.bf16.mxu0 0
    %2012 = vmatpush1.bf16.msra.mxu0 %v1977
    %2013 = vmatprep.subr.bf16.mxu0 0
    %2014 = vmatpush1.bf16.msra.mxu0 %v1978
    %2015 = vmatprep.subr.bf16.mxu0 0
    %2016 = vmatpush1.bf16.msra.mxu0 %v1979
    %2017 = vmatprep.subr.bf16.mxu0 0
    %2018 = vmatpush1.bf16.msra.mxu0 %v1980
    %2019 = vmatprep.subr.bf16.mxu0 0
    %2020 = vmatpush1.bf16.msra.mxu0 %v1981
    %2021 = vmatprep.subr.bf16.mxu0 0
    %2022 = vmatpush1.bf16.msra.mxu0 %v1982
    %2023 = vmatprep.subr.bf16.mxu0 0
    %2024 = vmatpush1.bf16.msra.mxu0 %v1983
    %2025 = vmatprep.subr.bf16.mxu0 0
    %2026 = vmatpush1.bf16.msra.mxu0 %v1984
    %2027 = vmatprep.subr.bf16.mxu0 0
    %2028 = vmatpush1.bf16.msra.mxu0 %v1985
    %2029 = vmatprep.subr.bf16.mxu0 0
    %2030 = vmatpush1.bf16.msra.mxu0 %v1986
    %2031 = vmatprep.subr.bf16.mxu0 0
    %2032 = vmatpush1.bf16.msra.mxu0 %v1987
    %2033 = vmatprep.subr.bf16.mxu0 0
    %2034 = vmatpush1.bf16.msra.mxu0 %v1988
    %2035 = vmatprep.subr.bf16.mxu0 0
    %2036 = vmatpush1.bf16.msra.mxu0 %v1989
    %2037 = vmatprep.subr.bf16.mxu0 0
    %2038 = vmatpush1.bf16.msra.mxu0 %v1990
    %2039 = vmatprep.mubr.bf16.mxu0 %v1906
    %2040 = vmatmul.mubr.bf16.gmra.mrb[0].mxu0 %v1905
    %v2041 = vpop.f32.mrb[0].mxu0
    %v2042 = vadd.f32 %v1910, %v2041
    %v2043 = vpop.f32.mrb[0].mxu0
    %v2044 = vpop.f32.mrb[0].mxu0
    %v2045 = vpop.f32.mrb[0].mxu0
    %2046 = vdwg.mxu0
    %v2047 = vmax.f32 %v2042, 0.0
    %v2048 = vld [vmem:[#allocation7 + $0x80] sm:$0xf]
    %v2049 = vld [vmem:[#allocation7 + $0x84] sm:$0xf]
    %v2050 = vld [vmem:[#allocation7 + $0x88] sm:$0xf]
    %v2051 = vld [vmem:[#allocation7 + $0x8c] sm:$0xf]
    %v2052 = vld [vmem:[#allocation7 + $0x90] sm:$0xf]
    %v2053 = vld [vmem:[#allocation7 + $0x94] sm:$0xf]
    %v2054 = vld [vmem:[#allocation7 + $0x98] sm:$0xf]
    %v2055 = vld [vmem:[#allocation7 + $0x9c] sm:$0xf]
    %v2056 = vld [vmem:[#allocation7 + $0xa0] sm:$0xf]
    %v2057 = vld [vmem:[#allocation7 + $0xa4] sm:$0xf]
    %v2058 = vld [vmem:[#allocation7 + $0xa8] sm:$0xf]
    %v2059 = vld [vmem:[#allocation7 + $0xac] sm:$0xf]
    %v2060 = vld [vmem:[#allocation7 + $0xb0] sm:$0xf]
    %v2061 = vld [vmem:[#allocation7 + $0xb4] sm:$0xf]
    %v2062 = vld [vmem:[#allocation7 + $0xb8] sm:$0xf]
    %v2063 = vld [vmem:[#allocation7 + $0xbc] sm:$0xf]
    %v2064 = vld [vmem:[%s9 + $0x2] sm:$0x1]
    %v2065 = vpack.c.bf16 %v2047, %v2047
    %v2066 = vlaneseq
    %v2067 = vshrl.u32 %v2066, 7
    %v2068 = vsub.s32 0, %v2067
    %v2069 = vrot.slane %v2064, %v2068
    %v2086 = vunpack.c.l.b16 %v2048
    %v2087 = vunpack.c.l.b16 %v2049
    %v2088 = vunpack.c.l.b16 %v2050
    %v2089 = vunpack.c.l.b16 %v2051
    %v2090 = vunpack.c.l.b16 %v2052
    %v2091 = vunpack.c.l.b16 %v2053
    %v2092 = vunpack.c.l.b16 %v2054
    %v2093 = vunpack.c.l.b16 %v2055
    %v2094 = vunpack.c.l.b16 %v2056
    %v2095 = vunpack.c.l.b16 %v2057
    %v2096 = vunpack.c.l.b16 %v2058
    %v2097 = vunpack.c.l.b16 %v2059
    %v2098 = vunpack.c.l.b16 %v2060
    %v2099 = vunpack.c.l.b16 %v2061
    %v2100 = vunpack.c.l.b16 %v2062
    %v2101 = vunpack.c.l.b16 %v2063
    %v2102 = vpack.c.b16 %v2087, %v2086
    %v2103 = vpack.c.b16 %v2089, %v2088
    %v2104 = vpack.c.b16 %v2091, %v2090
    %v2105 = vpack.c.b16 %v2093, %v2092
    %v2106 = vpack.c.b16 %v2095, %v2094
    %v2107 = vpack.c.b16 %v2097, %v2096
    %v2108 = vpack.c.b16 %v2099, %v2098
    %v2109 = vpack.c.b16 %v2101, %v2100
    %2118 = vmatprep.subr.bf16.mxu0 0
    %2119 = vmatpush1.bf16.msra.mxu0 %v2102
    %2120 = vmatprep.subr.bf16.mxu0 0
    %2121 = vmatpush1.bf16.msra.mxu0 %v2103
    %2122 = vmatprep.subr.bf16.mxu0 0
    %2123 = vmatpush1.bf16.msra.mxu0 %v2104
    %2124 = vmatprep.subr.bf16.mxu0 0
    %2125 = vmatpush1.bf16.msra.mxu0 %v2105
    %2126 = vmatprep.subr.bf16.mxu0 0
    %2127 = vmatpush1.bf16.msra.mxu0 %v2106
    %2128 = vmatprep.subr.bf16.mxu0 0
    %2129 = vmatpush1.bf16.msra.mxu0 %v2107
    %2130 = vmatprep.subr.bf16.mxu0 0
    %2131 = vmatpush1.bf16.msra.mxu0 %v2108
    %2132 = vmatprep.subr.bf16.mxu0 0
    %2133 = vmatpush1.bf16.msra.mxu0 %v2109
    %2134 = vmatprep.subr.bf16.mxu0 0
    %2135 = vmatpush1.bf16.msra.mxu0 0
    %2136 = vmatprep.subr.bf16.mxu0 0
    %2137 = vmatpush1.bf16.msra.mxu0 0
    %2138 = vmatprep.subr.bf16.mxu0 0
    %2139 = vmatpush1.bf16.msra.mxu0 0
    %2140 = vmatprep.subr.bf16.mxu0 0
    %2141 = vmatpush1.bf16.msra.mxu0 0
    %2142 = vmatprep.subr.bf16.mxu0 0
    %2143 = vmatpush1.bf16.msra.mxu0 0
    %2144 = vmatprep.subr.bf16.mxu0 0
    %2145 = vmatpush1.bf16.msra.mxu0 0
    %2146 = vmatprep.subr.bf16.mxu0 0
    %2147 = vmatpush1.bf16.msra.mxu0 0
    %2148 = vmatprep.subr.bf16.mxu0 0
    %2149 = vmatpush1.bf16.msra.mxu0 0
    %2150 = vmatprep.mubr.bf16.mxu0 0
    %2151 = vmatmul.mubr.bf16.gmra.mrb[0].mxu0 %v2065
    %v2152 = vpop.f32.mrb[0].mxu0
    %v2153 = vadd.f32 %v2069, %v2152
    %v2154 = vpop.f32.mrb[0].mxu0
    %v2155 = vpop.f32.mrb[0].mxu0
    %v2156 = vpop.f32.mrb[0].mxu0
    %2157 = vdwg.mxu0
    %v2158 = vmax.f32 %v2153, 0.0
    %v2159 = vld [vmem:[#allocation7 + $0xc0] sm:$0xf]
    %v2160 = vld [vmem:[#allocation7 + $0xc4] sm:$0xf]
    %v2161 = vld [vmem:[#allocation7 + $0xc8] sm:$0xf]
    %v2162 = vld [vmem:[#allocation7 + $0xcc] sm:$0xf]
    %v2163 = vld [vmem:[#allocation7 + $0xd0] sm:$0xf]
    %v2164 = vld [vmem:[#allocation7 + $0xd4] sm:$0xf]
    %v2165 = vld [vmem:[#allocation7 + $0xd8] sm:$0xf]
    %v2166 = vld [vmem:[#allocation7 + $0xdc] sm:$0xf]
    %v2167 = vld [vmem:[#allocation7 + $0xe0] sm:$0xf]
    %v2168 = vld [vmem:[#allocation7 + $0xe4] sm:$0xf]
    %v2169 = vld [vmem:[#allocation7 + $0xe8] sm:$0xf]
    %v2170 = vld [vmem:[#allocation7 + $0xec] sm:$0xf]
    %v2171 = vld [vmem:[#allocation7 + $0xf0] sm:$0xf]
    %v2172 = vld [vmem:[#allocation7 + $0xf4] sm:$0xf]
    %v2173 = vld [vmem:[#allocation7 + $0xf8] sm:$0xf]
    %v2174 = vld [vmem:[#allocation7 + $0xfc] sm:$0xf]
    %v2175 = vld [vmem:[%s9 + $0x3] sm:$0x1]
    %v2176 = vpack.c.bf16 %v2158, %v2158
    %v2177 = vlaneseq
    %v2178 = vshrl.u32 %v2177, 7
    %v2179 = vsub.s32 0, %v2178
    %v2180 = vrot.slane %v2175, %v2179
    %v2197 = vunpack.c.l.b16 %v2159
    %v2198 = vunpack.c.l.b16 %v2160
    %v2199 = vunpack.c.l.b16 %v2161
    %v2200 = vunpack.c.l.b16 %v2162
    %v2201 = vunpack.c.l.b16 %v2163
    %v2202 = vunpack.c.l.b16 %v2164
    %v2203 = vunpack.c.l.b16 %v2165
    %v2204 = vunpack.c.l.b16 %v2166
    %v2205 = vunpack.c.l.b16 %v2167
    %v2206 = vunpack.c.l.b16 %v2168
    %v2207 = vunpack.c.l.b16 %v2169
    %v2208 = vunpack.c.l.b16 %v2170
    %v2209 = vunpack.c.l.b16 %v2171
    %v2210 = vunpack.c.l.b16 %v2172
    %v2211 = vunpack.c.l.b16 %v2173
    %v2212 = vunpack.c.l.b16 %v2174
    %v2213 = vpack.c.b16 %v2198, %v2197
    %v2214 = vpack.c.b16 %v2200, %v2199
    %v2215 = vpack.c.b16 %v2202, %v2201
    %v2216 = vpack.c.b16 %v2204, %v2203
    %v2217 = vpack.c.b16 %v2206, %v2205
    %v2218 = vpack.c.b16 %v2208, %v2207
    %v2219 = vpack.c.b16 %v2210, %v2209
    %v2220 = vpack.c.b16 %v2212, %v2211
    %2229 = vmatprep.subr.bf16.mxu0 0
    %2230 = vmatpush1.bf16.msra.mxu0 %v2213
    %2231 = vmatprep.subr.bf16.mxu0 0
    %2232 = vmatpush1.bf16.msra.mxu0 %v2214
    %2233 = vmatprep.subr.bf16.mxu0 0
    %2234 = vmatpush1.bf16.msra.mxu0 %v2215
    %2235 = vmatprep.subr.bf16.mxu0 0
    %2236 = vmatpush1.bf16.msra.mxu0 %v2216
    %2237 = vmatprep.subr.bf16.mxu0 0
    %2238 = vmatpush1.bf16.msra.mxu0 %v2217
    %2239 = vmatprep.subr.bf16.mxu0 0
    %2240 = vmatpush1.bf16.msra.mxu0 %v2218
    %2241 = vmatprep.subr.bf16.mxu0 0
    %2242 = vmatpush1.bf16.msra.mxu0 %v2219
    %2243 = vmatprep.subr.bf16.mxu0 0
    %2244 = vmatpush1.bf16.msra.mxu0 %v2220
    %2245 = vmatprep.subr.bf16.mxu0 0
    %2246 = vmatpush1.bf16.msra.mxu0 0
    %2247 = vmatprep.subr.bf16.mxu0 0
    %2248 = vmatpush1.bf16.msra.mxu0 0
    %2249 = vmatprep.subr.bf16.mxu0 0
    %2250 = vmatpush1.bf16.msra.mxu0 0
    %2251 = vmatprep.subr.bf16.mxu0 0
    %2252 = vmatpush1.bf16.msra.mxu0 0
    %2253 = vmatprep.subr.bf16.mxu0 0
    %2254 = vmatpush1.bf16.msra.mxu0 0
    %2255 = vmatprep.subr.bf16.mxu0 0
    %2256 = vmatpush1.bf16.msra.mxu0 0
    %2257 = vmatprep.subr.bf16.mxu0 0
    %2258 = vmatpush1.bf16.msra.mxu0 0
    %2259 = vmatprep.subr.bf16.mxu0 0
    %2260 = vmatpush1.bf16.msra.mxu0 0
    %2261 = vmatprep.mubr.bf16.mxu0 0
    %2262 = vmatmul.mubr.bf16.gmra.mrb[0].mxu0 %v2176
    %v2263 = vpop.f32.mrb[0].mxu0
    %v2264 = vadd.f32 %v2180, %v2263
    %v2265 = vpop.f32.mrb[0].mxu0
    %v2266 = vpop.f32.mrb[0].mxu0
    %v2267 = vpop.f32.mrb[0].mxu0
    %2268 = vdwg.mxu0
    %vm2269 = vcmask 1024
    %2270 = vst.msk [vmem:[%s10] sm:$0x3] %vm2269, %v2264
    // Predicated region
    $region58: #{wb_attacker_forward.1} parent=1 // pred_check
      _
    $region59: #{wb_attacker_forward.1} parent=1 // pred_check_branch
      %2272 = sbr.rel (0) target = $region61
    $region60: #{wb_attacker_forward.1} parent=1 // pred_region
      _
    $region61: #{wb_attacker_forward.1} parent=1 // pred_fallthru
      _
    // Predicated region
    $region62: #{wb_attacker_forward.1} parent=1 // pred_check
      _
    $region63: #{wb_attacker_forward.1} parent=1 // pred_check_branch
      %2274 = sbr.rel (0) target = $region65
    $region64: #{wb_attacker_forward.1} parent=1 // pred_region
      _
    $region65: #{wb_attacker_forward.1} parent=1 // pred_fallthru
      _
    %2275 = vsyncpa [#allocation3], 1
    %2276 = vsyncpa [#allocation5], 1
    %2277 = vsyncpa [#allocation8], 1

</llo_original>
